<compile_context>
chip_gen: v6e
topology: v6e:2x2x1
jax: 0.10.0
libtpu: 0.0.40
codegen_flags: <defaults>
</compile_context>

<pallas_src>
import jax
import jax.numpy as jnp
from jax import lax
from jax.experimental import pallas as pl
from jax.experimental.pallas import tpu as pltpu

_SQRT_HALF = 0.7071067811865476  # 1/sqrt(2)


def _exact_gelu(x):
    # torch.nn.GELU(approximate='none'): 0.5 * x * (1 + erf(x / sqrt(2)))
    return 0.5 * x * (1.0 + lax.erf(x * _SQRT_HALF))


def feedforward_kernel(x_ref, w1_ref, b1_ref, w2_ref, b2_ref, o_ref):
    # x_ref : (TM, E)  row tile of tokens (marches along the row axis)
    # w1_ref: (E, G)   linearpre weight, pre-transposed to natural (K, N)
    # b1_ref: (1, G)
    # w2_ref: (G, E)   linearpost weight, pre-transposed to natural (K, N)
    # b2_ref: (1, E)
    x = x_ref[...]
    if x.dtype != w1_ref.dtype:
        x = x.astype(w1_ref.dtype)           # bf16 MXU path when weights are bf16

    # h = x @ W1t  -- natural contraction, fp32 accumulation on the MXU.
    h = jnp.dot(x, w1_ref[...], preferred_element_type=jnp.float32)
    h = h + b1_ref[...].astype(jnp.float32)
    h = _exact_gelu(h)                        # fp32 elementwise (safe on all chips)

    # y = gelu(h) @ W2t
    y = jnp.dot(h.astype(w2_ref.dtype), w2_ref[...],
                preferred_element_type=jnp.float32)
    y = y + b2_ref[...].astype(jnp.float32)
    o_ref[...] = y.astype(o_ref.dtype)


def feedforward(toks, w1, b1, w2, b2, *, tm=None, use_bf16_matmul=False):
    """toks: (B, S, E). w1: (G, E), b1: (G,), w2: (E, G), b2: (E,) (torch layout)."""
    B, S, E = toks.shape
    G = w1.shape[0]
    N = B * S

    x2d = toks.reshape(N, E)

    # Pre-transpose weights once in the wrapper (one-time HBM op, constant-
    # foldable for parameters under jit) so no in-kernel weight transposes.
    w1t = w1.T                                # (E, G)
    w2t = w2.T                                # (G, E)
    if use_bf16_matmul:
        # bf16 MXU path (v6e/v7x); accumulation stays fp32 inside the kernel.
        w1t = w1t.astype(jnp.bfloat16)
        w2t = w2t.astype(jnp.bfloat16)
    b1_2d = b1.reshape(1, G)
    b2_2d = b2.reshape(1, E)

    act_bytes = jnp.dtype(toks.dtype).itemsize
    w_bytes = jnp.dtype(w1t.dtype).itemsize
    bias_bytes = jnp.dtype(b1.dtype).itemsize

    try:
        vmem_cap = int(pltpu.get_tpu_info().vmem_capacity_bytes)
    except Exception:
        vmem_cap = 64 << 20                   # conservative (v7x per-TC) fallback

    # Resident (single-buffered) weight/bias footprint + per-row streaming cost:
    #   2x double-buffered (TM,E) in + 2x (TM,E) out   (act dtype)
    #   + fp32 (TM,G) hidden (incl. GELU temp)         (counted 2x)
    #   + fp32 (TM,E) y intermediate
    weight_resident = 2 * E * G * w_bytes + (G + E) * bias_bytes
    per_row = 4 * E * act_bytes + 2 * G * 4 + E * 4

    if tm is None:
        budget = int(vmem_cap * 0.75)         # headroom for Mosaic internals
        tm_fit = (budget - weight_resident) // per_row
        tm = int(max(128, min(1024, (tm_fit // 128) * 128)))

    if N <= tm:
        TM = N                                # one block == full array dims
    else:
        TM = max(128, (tm // 128) * 128)      # keep the row tile (8,128)-aligned
    grid_len = pl.cdiv(N, TM)
    # NOTE(v7x): ragged edge block (if any) is read-clamped / write-masked by
    # Pallas; garbage edge rows are harmless since rows are never contracted.

    cost = pl.CostEstimate(
        flops=4 * N * E * G,                  # two (N,E)x(E,G)-sized matmuls
        transcendentals=N * G,                # one erf per hidden element
        bytes_accessed=(2 * N * E * act_bytes
                        + 2 * E * G * w_bytes + (G + E) * bias_bytes),
    )

    def run(weight_buffers):
        wkw = {"pipeline_mode": pl.Buffered(1)} if weight_buffers == 1 else {}
        usage = weight_resident * weight_buffers + TM * per_row
        vmem_limit = int(min(max(int(usage * 1.3) + (8 << 20), 32 << 20), vmem_cap))
        return pl.pallas_call(
            feedforward_kernel,
            out_shape=jax.ShapeDtypeStruct((N, E), toks.dtype),
            grid_spec=pltpu.PrefetchScalarGridSpec(
                num_scalar_prefetch=0,
                grid=(grid_len,),
                in_specs=[
                    pl.BlockSpec((TM, E), lambda i: (i, 0)),        # x tile marches
                    pl.BlockSpec((E, G), lambda i: (0, 0), **wkw),  # W1t resident
                    pl.BlockSpec((1, G), lambda i: (0, 0), **wkw),  # b1 resident
                    pl.BlockSpec((G, E), lambda i: (0, 0), **wkw),  # W2t resident
                    pl.BlockSpec((1, E), lambda i: (0, 0), **wkw),  # b2 resident
                ],
                out_specs=pl.BlockSpec((TM, E), lambda i: (i, 0)),
            ),
            compiler_params=pltpu.CompilerParams(
                dimension_semantics=("parallel",),  # rows independent -> 2 TCs on v7x
                vmem_limit_bytes=vmem_limit,
            ),
            cost_estimate=cost,
        )(x2d, w1t, b1_2d, w2t, b2_2d)

    try:
        out2d = run(1)                        # single-buffer resident weights
    except Exception:
        out2d = run(2)                        # fall back to default double-buffering
    return out2d.reshape(B, S, E)


def _reference(toks, w1, b1, w2, b2):
    B, S, E = toks.shape
    h = toks.reshape(-1, E) @ w1.T + b1
    h = 0.5 * h * (1.0 + lax.erf(h * _SQRT_HALF))
    return (h @ w2.T + b2).reshape(B, S, E)


def _make_params(key, E, G, dtype=jnp.float32):
    k_w1, k_b1, k_w2, k_b2 = jax.random.split(key, 4)
    bound1 = 1.0 / jnp.sqrt(E)
    w1 = jax.random.uniform(k_w1, (G, E), minval=-bound1, maxval=bound1, dtype=dtype)
    b1 = jax.random.uniform(k_b1, (G,), minval=-bound1, maxval=bound1, dtype=dtype)
    bound2 = 1.0 / jnp.sqrt(G)
    w2 = jax.random.uniform(k_w2, (E, G), minval=-bound2, maxval=bound2, dtype=dtype)
    b2 = jax.random.uniform(k_b2, (E,), minval=-bound2, maxval=bound2, dtype=dtype)
    return w1, b1, w2, b2


if __name__ == "__main__":
    # Full-precision fp32 reference matmuls (avoids bf16-pass noise in the check).
    jax.config.update("jax_default_matmul_precision", "highest")
    key = jax.random.PRNGKey(0)

    # --- Small shapes consistent with the module: batch=2, seq=8, embed=32, gelu=64 ---
    B, S, E, G = 2, 8, 32, 64
    k_x, k_p = jax.random.split(key)
    toks = jax.random.normal(k_x, (B, S, E), dtype=jnp.float32)
    w1, b1, w2, b2 = _make_params(k_p, E, G)

    out = feedforward(toks, w1, b1, w2, b2)
    jax.block_until_ready(out)
    ref = _reference(toks, w1, b1, w2, b2)
    assert jnp.allclose(out, ref, atol=2e-3, rtol=2e-3), "mismatch (small, fp32)"

    # --- Tiled path with a ragged edge: N=600, TM=256 -> grid=3, last block 88 rows ---
    B2, S2, E2, G2 = 2, 300, 128, 256
    k_x2, k_p2 = jax.random.split(jax.random.PRNGKey(0))
    toks2 = jax.random.normal(k_x2, (B2, S2, E2), dtype=jnp.float32)
    w1b, b1b, w2b, b2b = _make_params(k_p2, E2, G2)

    out2 = feedforward(toks2, w1b, b1b, w2b, b2b, tm=256)
    jax.block_until_ready(out2)
    ref2 = _reference(toks2, w1b, b1b, w2b, b2b)
    assert jnp.allclose(out2, ref2, atol=2e-3, rtol=2e-3), "mismatch (tiled, fp32)"

    # --- bf16 MXU path (the big v6e/v7x throughput lever); looser tolerance ---
    out3 = feedforward(toks2, w1b, b1b, w2b, b2b, tm=256, use_bf16_matmul=True)
    jax.block_until_ready(out3)
    assert jnp.allclose(out3, ref2, atol=5e-2, rtol=5e-2), "mismatch (tiled, bf16 MXU)"

    print("KERNEL_OK")
</pallas_src>

<mosaic_0001>
module attributes {stable_mosaic.version = 11 : i64} {
  func.func @feedforward_kernel(%arg0: i32, %arg1: memref<16x32xf32, #tpu.memory_space<vmem>>, %arg2: memref<32x64xf32, #tpu.memory_space<vmem>>, %arg3: memref<1x64xf32, #tpu.memory_space<vmem>>, %arg4: memref<64x32xf32, #tpu.memory_space<vmem>>, %arg5: memref<1x32xf32, #tpu.memory_space<vmem>>, %arg6: memref<16x32xf32, #tpu.memory_space<vmem>>) attributes {dimension_semantics = [#tpu.dimension_semantics<parallel>], iteration_bounds = array<i64: 1>, scalar_prefetch = 0 : i64, scratch_operands = 0 : i64, tpu.core_type = #tpu.core_type<tc>, window_params = [{transform_indices = @transform_0, window_bounds = array<i64: 16, 32>}, {pipeline_mode = #tpu.pipeline_mode<synchronous>, transform_indices = @transform_1, window_bounds = array<i64: 32, 64>}, {pipeline_mode = #tpu.pipeline_mode<synchronous>, transform_indices = @transform_2, window_bounds = array<i64: 1, 64>}, {pipeline_mode = #tpu.pipeline_mode<synchronous>, transform_indices = @transform_3, window_bounds = array<i64: 64, 32>}, {pipeline_mode = #tpu.pipeline_mode<synchronous>, transform_indices = @transform_4, window_bounds = array<i64: 1, 32>}, {transform_indices = @transform_5, window_bounds = array<i64: 16, 32>}]} {
    %c0 = arith.constant 0 : index
    %c0_0 = arith.constant 0 : index
    %0 = vector.load %arg1[%c0, %c0_0] : memref<16x32xf32, #tpu.memory_space<vmem>>, vector<16x32xf32>
    %c0_1 = arith.constant 0 : index
    %c0_2 = arith.constant 0 : index
    %1 = vector.load %arg2[%c0_1, %c0_2] : memref<32x64xf32, #tpu.memory_space<vmem>>, vector<32x64xf32>
    %cst = arith.constant dense<0.000000e+00> : vector<16x64xf32>
    %2 = tpu.matmul %0, %1, %cst {dimension_numbers = #tpu.dot_dimension_numbers<[1], [0], [0], [1], [0, 0, 1, 1], [], []>, precision = #tpu.contract_precision<fp32>} : vector<16x32xf32>, vector<32x64xf32>, vector<16x64xf32> -> vector<16x64xf32>
    %c0_3 = arith.constant 0 : index
    %c0_4 = arith.constant 0 : index
    %3 = vector.load %arg3[%c0_3, %c0_4] : memref<1x64xf32, #tpu.memory_space<vmem>>, vector<1x64xf32>
    %4 = vector.broadcast %3 : vector<1x64xf32> to vector<16x64xf32>
    %5 = arith.addf %2, %4 : vector<16x64xf32>
    %cst_5 = arith.constant 5.000000e-01 : f32
    %6 = vector.broadcast %cst_5 : f32 to vector<16x64xf32>
    %7 = arith.mulf %6, %5 : vector<16x64xf32>
    %cst_6 = arith.constant 0.707106769 : f32
    %8 = vector.broadcast %cst_6 : f32 to vector<16x64xf32>
    %9 = arith.mulf %5, %8 : vector<16x64xf32>
    %10 = math.erf %9 : vector<16x64xf32>
    %cst_7 = arith.constant 1.000000e+00 : f32
    %11 = vector.broadcast %cst_7 : f32 to vector<16x64xf32>
    %12 = arith.addf %11, %10 : vector<16x64xf32>
    %13 = arith.mulf %7, %12 : vector<16x64xf32>
    %c0_8 = arith.constant 0 : index
    %c0_9 = arith.constant 0 : index
    %14 = vector.load %arg4[%c0_8, %c0_9] : memref<64x32xf32, #tpu.memory_space<vmem>>, vector<64x32xf32>
    %cst_10 = arith.constant dense<0.000000e+00> : vector<16x32xf32>
    %15 = tpu.matmul %13, %14, %cst_10 {dimension_numbers = #tpu.dot_dimension_numbers<[1], [0], [0], [1], [0, 0, 1, 1], [], []>, precision = #tpu.contract_precision<fp32>} : vector<16x64xf32>, vector<64x32xf32>, vector<16x32xf32> -> vector<16x32xf32>
    %c0_11 = arith.constant 0 : index
    %c0_12 = arith.constant 0 : index
    %16 = vector.load %arg5[%c0_11, %c0_12] : memref<1x32xf32, #tpu.memory_space<vmem>>, vector<1x32xf32>
    %17 = vector.broadcast %16 : vector<1x32xf32> to vector<16x32xf32>
    %18 = arith.addf %15, %17 : vector<16x32xf32>
    %c0_13 = arith.constant 0 : index
    %c0_14 = arith.constant 0 : index
    %19 = vector.load %arg6[%c0_13, %c0_14] : memref<16x32xf32, #tpu.memory_space<vmem>>, vector<16x32xf32>
    tpu.vector_store %arg6[%c0_13, %c0_14], %18 {strides = array<i32>} : memref<16x32xf32, #tpu.memory_space<vmem>>, vector<16x32xf32>,
    return
  }
  func.func @transform_0(%arg0: i32) -> (i32, i32) {
    %c0_i32 = arith.constant 0 : i32
    %c0_i32_0 = arith.constant 0 : i32
    return %arg0, %c0_i32 : i32, i32
  }
  func.func @transform_1(%arg0: i32) -> (i32, i32) {
    %c0_i32 = arith.constant 0 : i32
    %c0_i32_0 = arith.constant 0 : i32
    %c0_i32_1 = arith.constant 0 : i32
    return %c0_i32, %c0_i32_0 : i32, i32
  }
  func.func @transform_2(%arg0: i32) -> (i32, i32) {
    %c0_i32 = arith.constant 0 : i32
    %c0_i32_0 = arith.constant 0 : i32
    %c0_i32_1 = arith.constant 0 : i32
    return %c0_i32, %c0_i32_0 : i32, i32
  }
  func.func @transform_3(%arg0: i32) -> (i32, i32) {
    %c0_i32 = arith.constant 0 : i32
    %c0_i32_0 = arith.constant 0 : i32
    %c0_i32_1 = arith.constant 0 : i32
    return %c0_i32, %c0_i32_0 : i32, i32
  }
  func.func @transform_4(%arg0: i32) -> (i32, i32) {
    %c0_i32 = arith.constant 0 : i32
    %c0_i32_0 = arith.constant 0 : i32
    %c0_i32_1 = arith.constant 0 : i32
    return %c0_i32, %c0_i32_0 : i32, i32
  }
  func.func @transform_5(%arg0: i32) -> (i32, i32) {
    %c0_i32 = arith.constant 0 : i32
    %c0_i32_0 = arith.constant 0 : i32
    return %arg0, %c0_i32 : i32, i32
  }
}

module attributes {stable_mosaic.version = 11 : i64} {
  func.func @feedforward_kernel(%arg0: i32, %arg1: memref<16x32xf32, #tpu.memory_space<vmem>>, %arg2: memref<32x64xf32, #tpu.memory_space<vmem>>, %arg3: memref<1x64xf32, #tpu.memory_space<vmem>>, %arg4: memref<64x32xf32, #tpu.memory_space<vmem>>, %arg5: memref<1x32xf32, #tpu.memory_space<vmem>>, %arg6: memref<16x32xf32, #tpu.memory_space<vmem>>) attributes {dimension_semantics = [#tpu.dimension_semantics<parallel>], iteration_bounds = array<i64: 1>, scalar_prefetch = 0 : i64, scratch_operands = 0 : i64, tpu.core_type = #tpu.core_type<tc>, window_params = [{transform_indices = @transform_0, window_bounds = array<i64: 16, 32>}, {pipeline_mode = #tpu.pipeline_mode<synchronous>, transform_indices = @transform_1, window_bounds = array<i64: 32, 64>}, {pipeline_mode = #tpu.pipeline_mode<synchronous>, transform_indices = @transform_2, window_bounds = array<i64: 1, 64>}, {pipeline_mode = #tpu.pipeline_mode<synchronous>, transform_indices = @transform_3, window_bounds = array<i64: 64, 32>}, {pipeline_mode = #tpu.pipeline_mode<synchronous>, transform_indices = @transform_4, window_bounds = array<i64: 1, 32>}, {transform_indices = @transform_5, window_bounds = array<i64: 16, 32>}]} {
    %c0 = arith.constant 0 : index
    %c0_0 = arith.constant 0 : index
    %0 = vector.load %arg1[%c0, %c0_0] : memref<16x32xf32, #tpu.memory_space<vmem>>, vector<16x32xf32>
    %c0_1 = arith.constant 0 : index
    %c0_2 = arith.constant 0 : index
    %1 = vector.load %arg2[%c0_1, %c0_2] : memref<32x64xf32, #tpu.memory_space<vmem>>, vector<32x64xf32>
    %cst = arith.constant dense<0.000000e+00> : vector<16x64xf32>
    %2 = tpu.matmul %0, %1, %cst {dimension_numbers = #tpu.dot_dimension_numbers<[1], [0], [0], [1], [0, 0, 1, 1], [], []>, precision = #tpu.contract_precision<fp32>} : vector<16x32xf32>, vector<32x64xf32>, vector<16x64xf32> -> vector<16x64xf32>
    %c0_3 = arith.constant 0 : index
    %c0_4 = arith.constant 0 : index
    %3 = vector.load %arg3[%c0_3, %c0_4] : memref<1x64xf32, #tpu.memory_space<vmem>>, vector<1x64xf32>
    %4 = vector.broadcast %3 : vector<1x64xf32> to vector<16x64xf32>
    %5 = arith.addf %2, %4 : vector<16x64xf32>
    %cst_5 = arith.constant 5.000000e-01 : f32
    %6 = vector.broadcast %cst_5 : f32 to vector<16x64xf32>
    %7 = arith.mulf %6, %5 : vector<16x64xf32>
    %cst_6 = arith.constant 0.707106769 : f32
    %8 = vector.broadcast %cst_6 : f32 to vector<16x64xf32>
    %9 = arith.mulf %5, %8 : vector<16x64xf32>
    %10 = math.erf %9 : vector<16x64xf32>
    %cst_7 = arith.constant 1.000000e+00 : f32
    %11 = vector.broadcast %cst_7 : f32 to vector<16x64xf32>
    %12 = arith.addf %11, %10 : vector<16x64xf32>
    %13 = arith.mulf %7, %12 : vector<16x64xf32>
    %c0_8 = arith.constant 0 : index
    %c0_9 = arith.constant 0 : index
    %14 = vector.load %arg4[%c0_8, %c0_9] : memref<64x32xf32, #tpu.memory_space<vmem>>, vector<64x32xf32>
    %cst_10 = arith.constant dense<0.000000e+00> : vector<16x32xf32>
    %15 = tpu.matmul %13, %14, %cst_10 {dimension_numbers = #tpu.dot_dimension_numbers<[1], [0], [0], [1], [0, 0, 1, 1], [], []>, precision = #tpu.contract_precision<fp32>} : vector<16x64xf32>, vector<64x32xf32>, vector<16x32xf32> -> vector<16x32xf32>
    %c0_11 = arith.constant 0 : index
    %c0_12 = arith.constant 0 : index
    %16 = vector.load %arg5[%c0_11, %c0_12] : memref<1x32xf32, #tpu.memory_space<vmem>>, vector<1x32xf32>
    %17 = vector.broadcast %16 : vector<1x32xf32> to vector<16x32xf32>
    %18 = arith.addf %15, %17 : vector<16x32xf32>
    %c0_13 = arith.constant 0 : index
    %c0_14 = arith.constant 0 : index
    %19 = vector.load %arg6[%c0_13, %c0_14] : memref<16x32xf32, #tpu.memory_space<vmem>>, vector<16x32xf32>
    tpu.vector_store %arg6[%c0_13, %c0_14], %18 {strides = array<i32>} : memref<16x32xf32, #tpu.memory_space<vmem>>, vector<16x32xf32>,
    return
  }
  func.func @transform_0(%arg0: i32) -> (i32, i32) {
    %c0_i32 = arith.constant 0 : i32
    %c0_i32_0 = arith.constant 0 : i32
    return %arg0, %c0_i32 : i32, i32
  }
  func.func @transform_1(%arg0: i32) -> (i32, i32) {
    %c0_i32 = arith.constant 0 : i32
    %c0_i32_0 = arith.constant 0 : i32
    %c0_i32_1 = arith.constant 0 : i32
    return %c0_i32, %c0_i32_0 : i32, i32
  }
  func.func @transform_2(%arg0: i32) -> (i32, i32) {
    %c0_i32 = arith.constant 0 : i32
    %c0_i32_0 = arith.constant 0 : i32
    %c0_i32_1 = arith.constant 0 : i32
    return %c0_i32, %c0_i32_0 : i32, i32
  }
  func.func @transform_3(%arg0: i32) -> (i32, i32) {
    %c0_i32 = arith.constant 0 : i32
    %c0_i32_0 = arith.constant 0 : i32
    %c0_i32_1 = arith.constant 0 : i32
    return %c0_i32, %c0_i32_0 : i32, i32
  }
  func.func @transform_4(%arg0: i32) -> (i32, i32) {
    %c0_i32 = arith.constant 0 : i32
    %c0_i32_0 = arith.constant 0 : i32
    %c0_i32_1 = arith.constant 0 : i32
    return %c0_i32, %c0_i32_0 : i32, i32
  }
  func.func @transform_5(%arg0: i32) -> (i32, i32) {
    %c0_i32 = arith.constant 0 : i32
    %c0_i32_0 = arith.constant 0 : i32
    return %arg0, %c0_i32 : i32, i32
  }
}

</mosaic_0001>

<llo_original>
// kernel: tpu_custom_call.1
$region0: #{tpu_custom_call.1}
  #allocation0 [shape = 'u32[]', space=smem, size = 0x4, offset = 0x4, fixed_abs, tag = 'smem constant byte address 0x4 - core index']
  #allocation1 [shape = 'u32[144,128]{1,0:T(1,128)}', space=vmem, size = 0x12000, scoped, tag = 'internal scratch']
  %s0 = inlined_call_operand.vmem [shape: f32[16,32], index: 0, kind: input, shape index: {}]
  %s1 = inlined_call_operand.vmem [shape: f32[32,64], index: 1, kind: input, shape index: {}]
  %s2 = inlined_call_operand.vmem [shape: f32[1,64], index: 2, kind: input, shape index: {}]
  %s3 = inlined_call_operand.vmem [shape: f32[64,32], index: 3, kind: input, shape index: {}]
  %s4 = inlined_call_operand.vmem [shape: f32[1,32], index: 4, kind: input, shape index: {}]
  %s5 = inlined_call_operand.hbm [shape: f32[16,32], index: 5, kind: output, shape index: {}]
  %s6 = sld [smem:[#allocation0]]
  $region30: #{tpu_custom_call.1} parent=0
    _
  %s8 = ssub.s32 1, %s6
  %s9 = scalar_select 0, %s8, %s6
  $region1: #{tpu_custom_call.1} parent=0
    #allocation2 [shape = 'u8[8192]{0}', space=vmem, size = 0x2000, scoped, tag = 'output window, operand 0, single buffered']
    #allocation3 [shape = 's32[1]{0}', space=sflag, size = 0x4, scoped, tag = 'scoped memory for tpu_custom_call.1']
    %10 = vsyncpa [#allocation3], 0
    // Predicated region
    $region2: #{tpu_custom_call.1} parent=1 // pred_check
      _
    $region3: #{tpu_custom_call.1} parent=1 // pred_check_branch
      %12 = sbr.rel (0) target = $region5
    $region4: #{tpu_custom_call.1} parent=1 // pred_region
      _
    $region5: #{tpu_custom_call.1} parent=1 // pred_fallthru
      _
    // Predicated region
    $region6: #{tpu_custom_call.1} parent=1 // pred_check
      _
    $region7: #{tpu_custom_call.1} parent=1 // pred_check_branch
      %14 = sbr.rel (0) target = $region9
    $region8: #{tpu_custom_call.1} parent=1 // pred_region
      _
    $region9: #{tpu_custom_call.1} parent=1 // pred_fallthru
      _
    // Predicated region
    $region10: #{tpu_custom_call.1} parent=1 // pred_check
      _
    $region11: #{tpu_custom_call.1} parent=1 // pred_check_branch
      %16 = sbr.rel (0) target = $region13
    $region12: #{tpu_custom_call.1} parent=1 // pred_region
      _
    $region13: #{tpu_custom_call.1} parent=1 // pred_fallthru
      _
    // Predicated region
    $region14: #{tpu_custom_call.1} parent=1 // pred_check
      _
    $region15: #{tpu_custom_call.1} parent=1 // pred_check_branch
      %18 = sbr.rel (0) target = $region17
    $region16: #{tpu_custom_call.1} parent=1 // pred_region
      _
    $region17: #{tpu_custom_call.1} parent=1 // pred_fallthru
      _
    // Predicated region
    $region18: #{tpu_custom_call.1} parent=1 // pred_check
      _
    $region19: #{tpu_custom_call.1} parent=1 // pred_check_branch
      %20 = sbr.rel (0) target = $region21
    $region20: #{tpu_custom_call.1} parent=1 // pred_region
      _
    $region21: #{tpu_custom_call.1} parent=1 // pred_fallthru
      _
    %v21 = vld [vmem:[%s0] sm:$0xff]
    %v22 = vld [vmem:[%s0 + $0x8] sm:$0xff]
    %v23 = vld [vmem:[%s1] sm:$0xff]
    %v24 = vld [vmem:[%s1 + $0x8] sm:$0xff]
    %v25 = vld [vmem:[%s1 + $0x10] sm:$0xff]
    %v26 = vld [vmem:[%s1 + $0x18] sm:$0xff]
    %v27 = vld [vmem:[%s2] sm:$0x1]
    %v29 = vlaneseq
    %v30 = vshrl.u32 %v29, 7
    %v31 = vsub.s32 0, %v30
    %v32 = vrot.slane %v27, %v31
    %vm34 = vcmask 261120
    %v36 = vsel %vm34, %v21, 0
    %v39 = vsel %vm34, %v22, 0
    %41 = vmatprep.subr.mxu0 0.0
    %42 = vmatpush1.msra.mxu0 0.0
    %43 = vmatprep.subr.mxu0 0.0
    %44 = vmatpush1.msra.mxu0 0.0
    %45 = vmatprep.subr.mxu0 0.0
    %46 = vmatpush1.msra.mxu0 0.0
    %47 = vmatprep.subr.mxu0 0.0
    %48 = vmatpush1.msra.mxu0 0.0
    %49 = vmatprep.subr.mxu0 0.0
    %50 = vmatpush1.msra.mxu0 0.0
    %51 = vmatprep.subr.mxu0 0.0
    %52 = vmatpush1.msra.mxu0 0.0
    %53 = vmatprep.subr.mxu0 0.0
    %54 = vmatpush1.msra.mxu0 0.0
    %55 = vmatprep.subr.mxu0 0.0
    %56 = vmatpush1.msra.mxu0 0.0
    %57 = vmatprep.subr.mxu0 0.0
    %58 = vmatpush1.msra.mxu0 0.0
    %59 = vmatprep.subr.mxu0 0.0
    %60 = vmatpush1.msra.mxu0 0.0
    %61 = vmatprep.subr.mxu0 0.0
    %62 = vmatpush1.msra.mxu0 0.0
    %63 = vmatprep.subr.mxu0 0.0
    %64 = vmatpush1.msra.mxu0 0.0
    %65 = vmatprep.subr.mxu0 0.0
    %v66 = vand.u32 %v26, 4294901760
    %67 = vmatpush1.msra.mxu0 %v66
    %68 = vmatprep.subr.mxu0 0.0
    %v69 = vand.u32 %v25, 4294901760
    %70 = vmatpush1.msra.mxu0 %v69
    %71 = vmatprep.subr.mxu0 0.0
    %v72 = vand.u32 %v24, 4294901760
    %73 = vmatpush1.msra.mxu0 %v72
    %74 = vmatprep.subr.mxu0 0.0
    %v75 = vand.u32 %v23, 4294901760
    %76 = vmatpush1.msra.mxu0 %v75
    %77 = vmatprep.subr.mxu0 0.0
    %78 = vmatpush2.msra.mxu0 0.0
    %79 = vmatprep.subr.mxu0 0.0
    %80 = vmatpush2.msra.mxu0 0.0
    %81 = vmatprep.subr.mxu0 0.0
    %82 = vmatpush2.msra.mxu0 0.0
    %83 = vmatprep.subr.mxu0 0.0
    %84 = vmatpush2.msra.mxu0 0.0
    %85 = vmatprep.subr.mxu0 0.0
    %86 = vmatpush2.msra.mxu0 0.0
    %87 = vmatprep.subr.mxu0 0.0
    %88 = vmatpush2.msra.mxu0 0.0
    %89 = vmatprep.subr.mxu0 0.0
    %90 = vmatpush2.msra.mxu0 0.0
    %91 = vmatprep.subr.mxu0 0.0
    %92 = vmatpush2.msra.mxu0 0.0
    %93 = vmatprep.subr.mxu0 0.0
    %94 = vmatpush2.msra.mxu0 0.0
    %95 = vmatprep.subr.mxu0 0.0
    %96 = vmatpush2.msra.mxu0 0.0
    %97 = vmatprep.subr.mxu0 0.0
    %98 = vmatpush2.msra.mxu0 0.0
    %99 = vmatprep.subr.mxu0 0.0
    %100 = vmatpush2.msra.mxu0 0.0
    %101 = vmatprep.subr.mxu0 0.0
    %102 = vmatpush2.msra.mxu0 0.0
    %103 = vmatprep.subr.mxu0 0.0
    %104 = vmatpush2.msra.mxu0 0.0
    %105 = vmatprep.subr.mxu0 0.0
    %106 = vmatpush2.msra.mxu0 0.0
    %107 = vmatprep.subr.mxu0 0.0
    %108 = vmatpush2.msra.mxu0 0.0
    %109 = vmatprep.mubr.f32.mxu0 0.0
    %v110 = vand.u32 %v36, 4294901760
    %v111 = vsub.f32 %v36, %v110
    %v112 = vand.u32 %v111, 4294901760
    %v113 = vsub.f32 %v111, %v112
    %v114 = vand.u32 %v113, 4294901760
    %115 = vmatmul.mubr.f32.gmra.mxu0 %v114
    %v116 = vpop.f32.mrf.mxu0
    %v117 = vadd.f32 %v32, %v116
    %v118 = vpop.f32.mrf.mxu0
    %119 = vmatprep.mubr.f32.mxu0 0.0
    %v120 = vand.u32 %v39, 4294901760
    %v121 = vsub.f32 %v39, %v120
    %v122 = vand.u32 %v121, 4294901760
    %v123 = vsub.f32 %v121, %v122
    %v124 = vand.u32 %v123, 4294901760
    %125 = vmatmul.mubr.f32.gmra.mxu0 %v124
    %v126 = vpop.f32.mrf.mxu0
    %v127 = vadd.f32 %v32, %v126
    %v128 = vpop.f32.mrf.mxu0
    %129 = vdwg.mxu0
    %130 = vmatprep.subr.mxu0 0.0
    %131 = vmatpush1.msra.mxu0 0.0
    %132 = vmatprep.subr.mxu0 0.0
    %133 = vmatpush1.msra.mxu0 0.0
    %134 = vmatprep.subr.mxu0 0.0
    %135 = vmatpush1.msra.mxu0 0.0
    %136 = vmatprep.subr.mxu0 0.0
    %137 = vmatpush1.msra.mxu0 0.0
    %138 = vmatprep.subr.mxu0 0.0
    %139 = vmatpush1.msra.mxu0 0.0
    %140 = vmatprep.subr.mxu0 0.0
    %141 = vmatpush1.msra.mxu0 0.0
    %142 = vmatprep.subr.mxu0 0.0
    %143 = vmatpush1.msra.mxu0 0.0
    %144 = vmatprep.subr.mxu0 0.0
    %145 = vmatpush1.msra.mxu0 0.0
    %146 = vmatprep.subr.mxu0 0.0
    %147 = vmatpush1.msra.mxu0 0.0
    %148 = vmatprep.subr.mxu0 0.0
    %149 = vmatpush1.msra.mxu0 0.0
    %150 = vmatprep.subr.mxu0 0.0
    %151 = vmatpush1.msra.mxu0 0.0
    %152 = vmatprep.subr.mxu0 0.0
    %153 = vmatpush1.msra.mxu0 0.0
    %154 = vmatprep.subr.mxu0 0.0
    %v155 = vand.u32 %v26, 4294901760
    %v156 = vsub.f32 %v26, %v155
    %v157 = vand.u32 %v156, 4294901760
    %v158 = vsub.f32 %v156, %v157
    %v159 = vand.u32 %v158, 4294901760
    %160 = vmatpush1.msra.mxu0 %v159
    %161 = vmatprep.subr.mxu0 0.0
    %v162 = vand.u32 %v25, 4294901760
    %v163 = vsub.f32 %v25, %v162
    %v164 = vand.u32 %v163, 4294901760
    %v165 = vsub.f32 %v163, %v164
    %v166 = vand.u32 %v165, 4294901760
    %167 = vmatpush1.msra.mxu0 %v166
    %168 = vmatprep.subr.mxu0 0.0
    %v169 = vand.u32 %v24, 4294901760
    %v170 = vsub.f32 %v24, %v169
    %v171 = vand.u32 %v170, 4294901760
    %v172 = vsub.f32 %v170, %v171
    %v173 = vand.u32 %v172, 4294901760
    %174 = vmatpush1.msra.mxu0 %v173
    %175 = vmatprep.subr.mxu0 0.0
    %v176 = vand.u32 %v23, 4294901760
    %v177 = vsub.f32 %v23, %v176
    %v178 = vand.u32 %v177, 4294901760
    %v179 = vsub.f32 %v177, %v178
    %v180 = vand.u32 %v179, 4294901760
    %181 = vmatpush1.msra.mxu0 %v180
    %182 = vmatprep.subr.mxu0 0.0
    %183 = vmatpush2.msra.mxu0 0.0
    %184 = vmatprep.subr.mxu0 0.0
    %185 = vmatpush2.msra.mxu0 0.0
    %186 = vmatprep.subr.mxu0 0.0
    %187 = vmatpush2.msra.mxu0 0.0
    %188 = vmatprep.subr.mxu0 0.0
    %189 = vmatpush2.msra.mxu0 0.0
    %190 = vmatprep.subr.mxu0 0.0
    %191 = vmatpush2.msra.mxu0 0.0
    %192 = vmatprep.subr.mxu0 0.0
    %193 = vmatpush2.msra.mxu0 0.0
    %194 = vmatprep.subr.mxu0 0.0
    %195 = vmatpush2.msra.mxu0 0.0
    %196 = vmatprep.subr.mxu0 0.0
    %197 = vmatpush2.msra.mxu0 0.0
    %198 = vmatprep.subr.mxu0 0.0
    %199 = vmatpush2.msra.mxu0 0.0
    %200 = vmatprep.subr.mxu0 0.0
    %201 = vmatpush2.msra.mxu0 0.0
    %202 = vmatprep.subr.mxu0 0.0
    %203 = vmatpush2.msra.mxu0 0.0
    %204 = vmatprep.subr.mxu0 0.0
    %205 = vmatpush2.msra.mxu0 0.0
    %206 = vmatprep.subr.mxu0 0.0
    %207 = vmatpush2.msra.mxu0 0.0
    %208 = vmatprep.subr.mxu0 0.0
    %209 = vmatpush2.msra.mxu0 0.0
    %210 = vmatprep.subr.mxu0 0.0
    %211 = vmatpush2.msra.mxu0 0.0
    %212 = vmatprep.subr.mxu0 0.0
    %213 = vmatpush2.msra.mxu0 0.0
    %214 = vmatprep.mubr.f32.mxu0 0.0
    %v215 = vand.u32 %v36, 4294901760
    %216 = vmatmul.mubr.f32.gmra.mxu0 %v215
    %v217 = vpop.f32.mrf.mxu0
    %v218 = vadd.f32 %v117, %v217
    %v219 = vpop.f32.mrf.mxu0
    %220 = vmatprep.mubr.f32.mxu0 0.0
    %v221 = vand.u32 %v39, 4294901760
    %222 = vmatmul.mubr.f32.gmra.mxu0 %v221
    %v223 = vpop.f32.mrf.mxu0
    %v224 = vadd.f32 %v127, %v223
    %v225 = vpop.f32.mrf.mxu0
    %226 = vdwg.mxu0
    %227 = vmatprep.subr.mxu0 0.0
    %228 = vmatpush1.msra.mxu0 0.0
    %229 = vmatprep.subr.mxu0 0.0
    %230 = vmatpush1.msra.mxu0 0.0
    %231 = vmatprep.subr.mxu0 0.0
    %232 = vmatpush1.msra.mxu0 0.0
    %233 = vmatprep.subr.mxu0 0.0
    %234 = vmatpush1.msra.mxu0 0.0
    %235 = vmatprep.subr.mxu0 0.0
    %236 = vmatpush1.msra.mxu0 0.0
    %237 = vmatprep.subr.mxu0 0.0
    %238 = vmatpush1.msra.mxu0 0.0
    %239 = vmatprep.subr.mxu0 0.0
    %240 = vmatpush1.msra.mxu0 0.0
    %241 = vmatprep.subr.mxu0 0.0
    %242 = vmatpush1.msra.mxu0 0.0
    %243 = vmatprep.subr.mxu0 0.0
    %244 = vmatpush1.msra.mxu0 0.0
    %245 = vmatprep.subr.mxu0 0.0
    %246 = vmatpush1.msra.mxu0 0.0
    %247 = vmatprep.subr.mxu0 0.0
    %248 = vmatpush1.msra.mxu0 0.0
    %249 = vmatprep.subr.mxu0 0.0
    %250 = vmatpush1.msra.mxu0 0.0
    %251 = vmatprep.subr.mxu0 0.0
    %v252 = vand.u32 %v26, 4294901760
    %v253 = vsub.f32 %v26, %v252
    %254 = vmatpush1.msra.mxu0 %v253
    %255 = vmatprep.subr.mxu0 0.0
    %v256 = vand.u32 %v25, 4294901760
    %v257 = vsub.f32 %v25, %v256
    %258 = vmatpush1.msra.mxu0 %v257
    %259 = vmatprep.subr.mxu0 0.0
    %v260 = vand.u32 %v24, 4294901760
    %v261 = vsub.f32 %v24, %v260
    %262 = vmatpush1.msra.mxu0 %v261
    %263 = vmatprep.subr.mxu0 0.0
    %v264 = vand.u32 %v23, 4294901760
    %v265 = vsub.f32 %v23, %v264
    %266 = vmatpush1.msra.mxu0 %v265
    %267 = vmatprep.subr.mxu0 0.0
    %268 = vmatpush2.msra.mxu0 0.0
    %269 = vmatprep.subr.mxu0 0.0
    %270 = vmatpush2.msra.mxu0 0.0
    %271 = vmatprep.subr.mxu0 0.0
    %272 = vmatpush2.msra.mxu0 0.0
    %273 = vmatprep.subr.mxu0 0.0
    %274 = vmatpush2.msra.mxu0 0.0
    %275 = vmatprep.subr.mxu0 0.0
    %276 = vmatpush2.msra.mxu0 0.0
    %277 = vmatprep.subr.mxu0 0.0
    %278 = vmatpush2.msra.mxu0 0.0
    %279 = vmatprep.subr.mxu0 0.0
    %280 = vmatpush2.msra.mxu0 0.0
    %281 = vmatprep.subr.mxu0 0.0
    %282 = vmatpush2.msra.mxu0 0.0
    %283 = vmatprep.subr.mxu0 0.0
    %284 = vmatpush2.msra.mxu0 0.0
    %285 = vmatprep.subr.mxu0 0.0
    %286 = vmatpush2.msra.mxu0 0.0
    %287 = vmatprep.subr.mxu0 0.0
    %288 = vmatpush2.msra.mxu0 0.0
    %289 = vmatprep.subr.mxu0 0.0
    %290 = vmatpush2.msra.mxu0 0.0
    %291 = vmatprep.subr.mxu0 0.0
    %292 = vmatpush2.msra.mxu0 0.0
    %293 = vmatprep.subr.mxu0 0.0
    %294 = vmatpush2.msra.mxu0 0.0
    %295 = vmatprep.subr.mxu0 0.0
    %296 = vmatpush2.msra.mxu0 0.0
    %297 = vmatprep.subr.mxu0 0.0
    %298 = vmatpush2.msra.mxu0 0.0
    %299 = vmatprep.mubr.f32.mxu0 0.0
    %v300 = vand.u32 %v36, 4294901760
    %v301 = vsub.f32 %v36, %v300
    %302 = vmatmul.mubr.f32.gmra.mxu0 %v301
    %v303 = vpop.f32.mrf.mxu0
    %v304 = vadd.f32 %v218, %v303
    %v305 = vpop.f32.mrf.mxu0
    %306 = vmatprep.mubr.f32.mxu0 0.0
    %v307 = vand.u32 %v39, 4294901760
    %v308 = vsub.f32 %v39, %v307
    %309 = vmatmul.mubr.f32.gmra.mxu0 %v308
    %v310 = vpop.f32.mrf.mxu0
    %v311 = vadd.f32 %v224, %v310
    %v312 = vpop.f32.mrf.mxu0
    %313 = vdwg.mxu0
    %314 = vmatprep.subr.mxu0 0.0
    %315 = vmatpush1.msra.mxu0 0.0
    %316 = vmatprep.subr.mxu0 0.0
    %317 = vmatpush1.msra.mxu0 0.0
    %318 = vmatprep.subr.mxu0 0.0
    %319 = vmatpush1.msra.mxu0 0.0
    %320 = vmatprep.subr.mxu0 0.0
    %321 = vmatpush1.msra.mxu0 0.0
    %322 = vmatprep.subr.mxu0 0.0
    %323 = vmatpush1.msra.mxu0 0.0
    %324 = vmatprep.subr.mxu0 0.0
    %325 = vmatpush1.msra.mxu0 0.0
    %326 = vmatprep.subr.mxu0 0.0
    %327 = vmatpush1.msra.mxu0 0.0
    %328 = vmatprep.subr.mxu0 0.0
    %329 = vmatpush1.msra.mxu0 0.0
    %330 = vmatprep.subr.mxu0 0.0
    %331 = vmatpush1.msra.mxu0 0.0
    %332 = vmatprep.subr.mxu0 0.0
    %333 = vmatpush1.msra.mxu0 0.0
    %334 = vmatprep.subr.mxu0 0.0
    %335 = vmatpush1.msra.mxu0 0.0
    %336 = vmatprep.subr.mxu0 0.0
    %337 = vmatpush1.msra.mxu0 0.0
    %338 = vmatprep.subr.mxu0 0.0
    %v339 = vand.u32 %v26, 4294901760
    %340 = vmatpush1.msra.mxu0 %v339
    %341 = vmatprep.subr.mxu0 0.0
    %v342 = vand.u32 %v25, 4294901760
    %343 = vmatpush1.msra.mxu0 %v342
    %344 = vmatprep.subr.mxu0 0.0
    %v345 = vand.u32 %v24, 4294901760
    %346 = vmatpush1.msra.mxu0 %v345
    %347 = vmatprep.subr.mxu0 0.0
    %v348 = vand.u32 %v23, 4294901760
    %349 = vmatpush1.msra.mxu0 %v348
    %350 = vmatprep.subr.mxu0 0.0
    %351 = vmatpush2.msra.mxu0 0.0
    %352 = vmatprep.subr.mxu0 0.0
    %353 = vmatpush2.msra.mxu0 0.0
    %354 = vmatprep.subr.mxu0 0.0
    %355 = vmatpush2.msra.mxu0 0.0
    %356 = vmatprep.subr.mxu0 0.0
    %357 = vmatpush2.msra.mxu0 0.0
    %358 = vmatprep.subr.mxu0 0.0
    %359 = vmatpush2.msra.mxu0 0.0
    %360 = vmatprep.subr.mxu0 0.0
    %361 = vmatpush2.msra.mxu0 0.0
    %362 = vmatprep.subr.mxu0 0.0
    %363 = vmatpush2.msra.mxu0 0.0
    %364 = vmatprep.subr.mxu0 0.0
    %365 = vmatpush2.msra.mxu0 0.0
    %366 = vmatprep.subr.mxu0 0.0
    %367 = vmatpush2.msra.mxu0 0.0
    %368 = vmatprep.subr.mxu0 0.0
    %369 = vmatpush2.msra.mxu0 0.0
    %370 = vmatprep.subr.mxu0 0.0
    %371 = vmatpush2.msra.mxu0 0.0
    %372 = vmatprep.subr.mxu0 0.0
    %373 = vmatpush2.msra.mxu0 0.0
    %374 = vmatprep.subr.mxu0 0.0
    %375 = vmatpush2.msra.mxu0 0.0
    %376 = vmatprep.subr.mxu0 0.0
    %377 = vmatpush2.msra.mxu0 0.0
    %378 = vmatprep.subr.mxu0 0.0
    %379 = vmatpush2.msra.mxu0 0.0
    %380 = vmatprep.subr.mxu0 0.0
    %381 = vmatpush2.msra.mxu0 0.0
    %382 = vmatprep.mubr.f32.mxu0 0.0
    %v383 = vand.u32 %v36, 4294901760
    %v384 = vsub.f32 %v36, %v383
    %v385 = vand.u32 %v384, 4294901760
    %386 = vmatmul.mubr.f32.gmra.mxu0 %v385
    %v387 = vpop.f32.mrf.mxu0
    %v388 = vadd.f32 %v304, %v387
    %v389 = vpop.f32.mrf.mxu0
    %390 = vmatprep.mubr.f32.mxu0 0.0
    %v391 = vand.u32 %v39, 4294901760
    %v392 = vsub.f32 %v39, %v391
    %v393 = vand.u32 %v392, 4294901760
    %394 = vmatmul.mubr.f32.gmra.mxu0 %v393
    %v395 = vpop.f32.mrf.mxu0
    %v396 = vadd.f32 %v311, %v395
    %v397 = vpop.f32.mrf.mxu0
    %398 = vdwg.mxu0
    %399 = vmatprep.subr.mxu0 0.0
    %400 = vmatpush1.msra.mxu0 0.0
    %401 = vmatprep.subr.mxu0 0.0
    %402 = vmatpush1.msra.mxu0 0.0
    %403 = vmatprep.subr.mxu0 0.0
    %404 = vmatpush1.msra.mxu0 0.0
    %405 = vmatprep.subr.mxu0 0.0
    %406 = vmatpush1.msra.mxu0 0.0
    %407 = vmatprep.subr.mxu0 0.0
    %408 = vmatpush1.msra.mxu0 0.0
    %409 = vmatprep.subr.mxu0 0.0
    %410 = vmatpush1.msra.mxu0 0.0
    %411 = vmatprep.subr.mxu0 0.0
    %412 = vmatpush1.msra.mxu0 0.0
    %413 = vmatprep.subr.mxu0 0.0
    %414 = vmatpush1.msra.mxu0 0.0
    %415 = vmatprep.subr.mxu0 0.0
    %416 = vmatpush1.msra.mxu0 0.0
    %417 = vmatprep.subr.mxu0 0.0
    %418 = vmatpush1.msra.mxu0 0.0
    %419 = vmatprep.subr.mxu0 0.0
    %420 = vmatpush1.msra.mxu0 0.0
    %421 = vmatprep.subr.mxu0 0.0
    %422 = vmatpush1.msra.mxu0 0.0
    %423 = vmatprep.subr.mxu0 0.0
    %v424 = vand.u32 %v26, 4294901760
    %v425 = vsub.f32 %v26, %v424
    %v426 = vand.u32 %v425, 4294901760
    %427 = vmatpush1.msra.mxu0 %v426
    %428 = vmatprep.subr.mxu0 0.0
    %v429 = vand.u32 %v25, 4294901760
    %v430 = vsub.f32 %v25, %v429
    %v431 = vand.u32 %v430, 4294901760
    %432 = vmatpush1.msra.mxu0 %v431
    %433 = vmatprep.subr.mxu0 0.0
    %v434 = vand.u32 %v24, 4294901760
    %v435 = vsub.f32 %v24, %v434
    %v436 = vand.u32 %v435, 4294901760
    %437 = vmatpush1.msra.mxu0 %v436
    %438 = vmatprep.subr.mxu0 0.0
    %v439 = vand.u32 %v23, 4294901760
    %v440 = vsub.f32 %v23, %v439
    %v441 = vand.u32 %v440, 4294901760
    %442 = vmatpush1.msra.mxu0 %v441
    %443 = vmatprep.subr.mxu0 0.0
    %444 = vmatpush2.msra.mxu0 0.0
    %445 = vmatprep.subr.mxu0 0.0
    %446 = vmatpush2.msra.mxu0 0.0
    %447 = vmatprep.subr.mxu0 0.0
    %448 = vmatpush2.msra.mxu0 0.0
    %449 = vmatprep.subr.mxu0 0.0
    %450 = vmatpush2.msra.mxu0 0.0
    %451 = vmatprep.subr.mxu0 0.0
    %452 = vmatpush2.msra.mxu0 0.0
    %453 = vmatprep.subr.mxu0 0.0
    %454 = vmatpush2.msra.mxu0 0.0
    %455 = vmatprep.subr.mxu0 0.0
    %456 = vmatpush2.msra.mxu0 0.0
    %457 = vmatprep.subr.mxu0 0.0
    %458 = vmatpush2.msra.mxu0 0.0
    %459 = vmatprep.subr.mxu0 0.0
    %460 = vmatpush2.msra.mxu0 0.0
    %461 = vmatprep.subr.mxu0 0.0
    %462 = vmatpush2.msra.mxu0 0.0
    %463 = vmatprep.subr.mxu0 0.0
    %464 = vmatpush2.msra.mxu0 0.0
    %465 = vmatprep.subr.mxu0 0.0
    %466 = vmatpush2.msra.mxu0 0.0
    %467 = vmatprep.subr.mxu0 0.0
    %468 = vmatpush2.msra.mxu0 0.0
    %469 = vmatprep.subr.mxu0 0.0
    %470 = vmatpush2.msra.mxu0 0.0
    %471 = vmatprep.subr.mxu0 0.0
    %472 = vmatpush2.msra.mxu0 0.0
    %473 = vmatprep.subr.mxu0 0.0
    %474 = vmatpush2.msra.mxu0 0.0
    %475 = vmatprep.mubr.f32.mxu0 0.0
    %v476 = vand.u32 %v36, 4294901760
    %477 = vmatmul.mubr.f32.gmra.mxu0 %v476
    %v478 = vpop.f32.mrf.mxu0
    %v479 = vadd.f32 %v388, %v478
    %v480 = vpop.f32.mrf.mxu0
    %481 = vmatprep.mubr.f32.mxu0 0.0
    %v482 = vand.u32 %v39, 4294901760
    %483 = vmatmul.mubr.f32.gmra.mxu0 %v482
    %v484 = vpop.f32.mrf.mxu0
    %v485 = vadd.f32 %v396, %v484
    %v486 = vpop.f32.mrf.mxu0
    %487 = vdwg.mxu0
    %488 = vmatprep.subr.mxu0 0.0
    %489 = vmatpush1.msra.mxu0 0.0
    %490 = vmatprep.subr.mxu0 0.0
    %491 = vmatpush1.msra.mxu0 0.0
    %492 = vmatprep.subr.mxu0 0.0
    %493 = vmatpush1.msra.mxu0 0.0
    %494 = vmatprep.subr.mxu0 0.0
    %495 = vmatpush1.msra.mxu0 0.0
    %496 = vmatprep.subr.mxu0 0.0
    %497 = vmatpush1.msra.mxu0 0.0
    %498 = vmatprep.subr.mxu0 0.0
    %499 = vmatpush1.msra.mxu0 0.0
    %500 = vmatprep.subr.mxu0 0.0
    %501 = vmatpush1.msra.mxu0 0.0
    %502 = vmatprep.subr.mxu0 0.0
    %503 = vmatpush1.msra.mxu0 0.0
    %504 = vmatprep.subr.mxu0 0.0
    %505 = vmatpush1.msra.mxu0 0.0
    %506 = vmatprep.subr.mxu0 0.0
    %507 = vmatpush1.msra.mxu0 0.0
    %508 = vmatprep.subr.mxu0 0.0
    %509 = vmatpush1.msra.mxu0 0.0
    %510 = vmatprep.subr.mxu0 0.0
    %511 = vmatpush1.msra.mxu0 0.0
    %512 = vmatprep.subr.mxu0 0.0
    %v513 = vand.u32 %v26, 4294901760
    %514 = vmatpush1.msra.mxu0 %v513
    %515 = vmatprep.subr.mxu0 0.0
    %v516 = vand.u32 %v25, 4294901760
    %517 = vmatpush1.msra.mxu0 %v516
    %518 = vmatprep.subr.mxu0 0.0
    %v519 = vand.u32 %v24, 4294901760
    %520 = vmatpush1.msra.mxu0 %v519
    %521 = vmatprep.subr.mxu0 0.0
    %v522 = vand.u32 %v23, 4294901760
    %523 = vmatpush1.msra.mxu0 %v522
    %524 = vmatprep.subr.mxu0 0.0
    %525 = vmatpush2.msra.mxu0 0.0
    %526 = vmatprep.subr.mxu0 0.0
    %527 = vmatpush2.msra.mxu0 0.0
    %528 = vmatprep.subr.mxu0 0.0
    %529 = vmatpush2.msra.mxu0 0.0
    %530 = vmatprep.subr.mxu0 0.0
    %531 = vmatpush2.msra.mxu0 0.0
    %532 = vmatprep.subr.mxu0 0.0
    %533 = vmatpush2.msra.mxu0 0.0
    %534 = vmatprep.subr.mxu0 0.0
    %535 = vmatpush2.msra.mxu0 0.0
    %536 = vmatprep.subr.mxu0 0.0
    %537 = vmatpush2.msra.mxu0 0.0
    %538 = vmatprep.subr.mxu0 0.0
    %539 = vmatpush2.msra.mxu0 0.0
    %540 = vmatprep.subr.mxu0 0.0
    %541 = vmatpush2.msra.mxu0 0.0
    %542 = vmatprep.subr.mxu0 0.0
    %543 = vmatpush2.msra.mxu0 0.0
    %544 = vmatprep.subr.mxu0 0.0
    %545 = vmatpush2.msra.mxu0 0.0
    %546 = vmatprep.subr.mxu0 0.0
    %547 = vmatpush2.msra.mxu0 0.0
    %548 = vmatprep.subr.mxu0 0.0
    %549 = vmatpush2.msra.mxu0 0.0
    %550 = vmatprep.subr.mxu0 0.0
    %551 = vmatpush2.msra.mxu0 0.0
    %552 = vmatprep.subr.mxu0 0.0
    %553 = vmatpush2.msra.mxu0 0.0
    %554 = vmatprep.subr.mxu0 0.0
    %555 = vmatpush2.msra.mxu0 0.0
    %556 = vmatprep.mubr.f32.mxu0 0.0
    %v557 = vand.u32 %v36, 4294901760
    %558 = vmatmul.mubr.f32.gmra.mxu0 %v557
    %v559 = vpop.f32.mrf.mxu0
    %v560 = vadd.f32 %v479, %v559
    %v561 = vpop.f32.mrf.mxu0
    %562 = vmatprep.mubr.f32.mxu0 0.0
    %v563 = vand.u32 %v39, 4294901760
    %564 = vmatmul.mubr.f32.gmra.mxu0 %v563
    %v565 = vpop.f32.mrf.mxu0
    %v566 = vadd.f32 %v485, %v565
    %v567 = vpop.f32.mrf.mxu0
    %568 = vdwg.mxu0
    %v569 = vmul.f32 %v560, 0.5
    %v570 = vmul.f32 %v566, 0.5
    %v571 = vmul.f32 %v560, 0.70710677
    %v572 = vmul.f32 %v566, 0.70710677
    %v573 = verf.f32.pop %v571
    %v574 = verf.f32.pop %v572
    %v575 = vadd.f32 %v573, 1.0
    %v576 = vadd.f32 %v574, 1.0
    %v577 = vmul.f32 %v569, %v575
    %v578 = vmul.f32 %v570, %v576
    %v579 = vld [vmem:[%s3] sm:$0xff]
    %v580 = vld [vmem:[%s3 + $0x8] sm:$0xff]
    %v581 = vld [vmem:[%s3 + $0x10] sm:$0xff]
    %v582 = vld [vmem:[%s3 + $0x18] sm:$0xff]
    %v583 = vld [vmem:[%s3 + $0x20] sm:$0xff]
    %v584 = vld [vmem:[%s3 + $0x28] sm:$0xff]
    %v585 = vld [vmem:[%s3 + $0x30] sm:$0xff]
    %v586 = vld [vmem:[%s3 + $0x38] sm:$0xff]
    %v587 = vld [vmem:[%s4] sm:$0x1]
    %v589 = vlaneseq
    %v590 = vshrl.u32 %v589, 7
    %v591 = vsub.s32 0, %v590
    %v592 = vrot.slane %v587, %v591
    %vm594 = vcmask 523264
    %v596 = vsel %vm594, %v577, 0
    %v599 = vsel %vm594, %v578, 0
    %601 = vmatprep.subr.mxu0 0.0
    %602 = vmatpush1.msra.mxu0 0.0
    %603 = vmatprep.subr.mxu0 0.0
    %604 = vmatpush1.msra.mxu0 0.0
    %605 = vmatprep.subr.mxu0 0.0
    %606 = vmatpush1.msra.mxu0 0.0
    %607 = vmatprep.subr.mxu0 0.0
    %608 = vmatpush1.msra.mxu0 0.0
    %609 = vmatprep.subr.mxu0 0.0
    %610 = vmatpush1.msra.mxu0 0.0
    %611 = vmatprep.subr.mxu0 0.0
    %612 = vmatpush1.msra.mxu0 0.0
    %613 = vmatprep.subr.mxu0 0.0
    %614 = vmatpush1.msra.mxu0 0.0
    %615 = vmatprep.subr.mxu0 0.0
    %616 = vmatpush1.msra.mxu0 0.0
    %617 = vmatprep.subr.mxu0 0.0
    %v618 = vand.u32 %v586, 4294901760
    %619 = vmatpush1.msra.mxu0 %v618
    %620 = vmatprep.subr.mxu0 0.0
    %v621 = vand.u32 %v585, 4294901760
    %622 = vmatpush1.msra.mxu0 %v621
    %623 = vmatprep.subr.mxu0 0.0
    %v624 = vand.u32 %v584, 4294901760
    %625 = vmatpush1.msra.mxu0 %v624
    %626 = vmatprep.subr.mxu0 0.0
    %v627 = vand.u32 %v583, 4294901760
    %628 = vmatpush1.msra.mxu0 %v627
    %629 = vmatprep.subr.mxu0 0.0
    %v630 = vand.u32 %v582, 4294901760
    %631 = vmatpush1.msra.mxu0 %v630
    %632 = vmatprep.subr.mxu0 0.0
    %v633 = vand.u32 %v581, 4294901760
    %634 = vmatpush1.msra.mxu0 %v633
    %635 = vmatprep.subr.mxu0 0.0
    %v636 = vand.u32 %v580, 4294901760
    %637 = vmatpush1.msra.mxu0 %v636
    %638 = vmatprep.subr.mxu0 0.0
    %v639 = vand.u32 %v579, 4294901760
    %640 = vmatpush1.msra.mxu0 %v639
    %641 = vmatprep.subr.mxu0 0.0
    %642 = vmatpush2.msra.mxu0 0.0
    %643 = vmatprep.subr.mxu0 0.0
    %644 = vmatpush2.msra.mxu0 0.0
    %645 = vmatprep.subr.mxu0 0.0
    %646 = vmatpush2.msra.mxu0 0.0
    %647 = vmatprep.subr.mxu0 0.0
    %648 = vmatpush2.msra.mxu0 0.0
    %649 = vmatprep.subr.mxu0 0.0
    %650 = vmatpush2.msra.mxu0 0.0
    %651 = vmatprep.subr.mxu0 0.0
    %652 = vmatpush2.msra.mxu0 0.0
    %653 = vmatprep.subr.mxu0 0.0
    %654 = vmatpush2.msra.mxu0 0.0
    %655 = vmatprep.subr.mxu0 0.0
    %656 = vmatpush2.msra.mxu0 0.0
    %657 = vmatprep.subr.mxu0 0.0
    %658 = vmatpush2.msra.mxu0 0.0
    %659 = vmatprep.subr.mxu0 0.0
    %660 = vmatpush2.msra.mxu0 0.0
    %661 = vmatprep.subr.mxu0 0.0
    %662 = vmatpush2.msra.mxu0 0.0
    %663 = vmatprep.subr.mxu0 0.0
    %664 = vmatpush2.msra.mxu0 0.0
    %665 = vmatprep.subr.mxu0 0.0
    %666 = vmatpush2.msra.mxu0 0.0
    %667 = vmatprep.subr.mxu0 0.0
    %668 = vmatpush2.msra.mxu0 0.0
    %669 = vmatprep.subr.mxu0 0.0
    %670 = vmatpush2.msra.mxu0 0.0
    %671 = vmatprep.subr.mxu0 0.0
    %672 = vmatpush2.msra.mxu0 0.0
    %673 = vmatprep.mubr.f32.mxu0 0.0
    %v674 = vand.u32 %v596, 4294901760
    %v675 = vsub.f32 %v596, %v674
    %v676 = vand.u32 %v675, 4294901760
    %v677 = vsub.f32 %v675, %v676
    %v678 = vand.u32 %v677, 4294901760
    %679 = vmatmul.mubr.f32.gmra.mxu0 %v678
    %v680 = vpop.f32.mrf.mxu0
    %v681 = vadd.f32 %v592, %v680
    %v682 = vpop.f32.mrf.mxu0
    %683 = vmatprep.mubr.f32.mxu0 0.0
    %v684 = vand.u32 %v599, 4294901760
    %v685 = vsub.f32 %v599, %v684
    %v686 = vand.u32 %v685, 4294901760
    %v687 = vsub.f32 %v685, %v686
    %v688 = vand.u32 %v687, 4294901760
    %689 = vmatmul.mubr.f32.gmra.mxu0 %v688
    %v690 = vpop.f32.mrf.mxu0
    %v691 = vadd.f32 %v592, %v690
    %v692 = vpop.f32.mrf.mxu0
    %693 = vdwg.mxu0
    %694 = vmatprep.subr.mxu0 0.0
    %695 = vmatpush1.msra.mxu0 0.0
    %696 = vmatprep.subr.mxu0 0.0
    %697 = vmatpush1.msra.mxu0 0.0
    %698 = vmatprep.subr.mxu0 0.0
    %699 = vmatpush1.msra.mxu0 0.0
    %700 = vmatprep.subr.mxu0 0.0
    %701 = vmatpush1.msra.mxu0 0.0
    %702 = vmatprep.subr.mxu0 0.0
    %703 = vmatpush1.msra.mxu0 0.0
    %704 = vmatprep.subr.mxu0 0.0
    %705 = vmatpush1.msra.mxu0 0.0
    %706 = vmatprep.subr.mxu0 0.0
    %707 = vmatpush1.msra.mxu0 0.0
    %708 = vmatprep.subr.mxu0 0.0
    %709 = vmatpush1.msra.mxu0 0.0
    %710 = vmatprep.subr.mxu0 0.0
    %v711 = vand.u32 %v586, 4294901760
    %v712 = vsub.f32 %v586, %v711
    %v713 = vand.u32 %v712, 4294901760
    %v714 = vsub.f32 %v712, %v713
    %v715 = vand.u32 %v714, 4294901760
    %716 = vmatpush1.msra.mxu0 %v715
    %717 = vmatprep.subr.mxu0 0.0
    %v718 = vand.u32 %v585, 4294901760
    %v719 = vsub.f32 %v585, %v718
    %v720 = vand.u32 %v719, 4294901760
    %v721 = vsub.f32 %v719, %v720
    %v722 = vand.u32 %v721, 4294901760
    %723 = vmatpush1.msra.mxu0 %v722
    %724 = vmatprep.subr.mxu0 0.0
    %v725 = vand.u32 %v584, 4294901760
    %v726 = vsub.f32 %v584, %v725
    %v727 = vand.u32 %v726, 4294901760
    %v728 = vsub.f32 %v726, %v727
    %v729 = vand.u32 %v728, 4294901760
    %730 = vmatpush1.msra.mxu0 %v729
    %731 = vmatprep.subr.mxu0 0.0
    %v732 = vand.u32 %v583, 4294901760
    %v733 = vsub.f32 %v583, %v732
    %v734 = vand.u32 %v733, 4294901760
    %v735 = vsub.f32 %v733, %v734
    %v736 = vand.u32 %v735, 4294901760
    %737 = vmatpush1.msra.mxu0 %v736
    %738 = vmatprep.subr.mxu0 0.0
    %v739 = vand.u32 %v582, 4294901760
    %v740 = vsub.f32 %v582, %v739
    %v741 = vand.u32 %v740, 4294901760
    %v742 = vsub.f32 %v740, %v741
    %v743 = vand.u32 %v742, 4294901760
    %744 = vmatpush1.msra.mxu0 %v743
    %745 = vmatprep.subr.mxu0 0.0
    %v746 = vand.u32 %v581, 4294901760
    %v747 = vsub.f32 %v581, %v746
    %v748 = vand.u32 %v747, 4294901760
    %v749 = vsub.f32 %v747, %v748
    %v750 = vand.u32 %v749, 4294901760
    %751 = vmatpush1.msra.mxu0 %v750
    %752 = vmatprep.subr.mxu0 0.0
    %v753 = vand.u32 %v580, 4294901760
    %v754 = vsub.f32 %v580, %v753
    %v755 = vand.u32 %v754, 4294901760
    %v756 = vsub.f32 %v754, %v755
    %v757 = vand.u32 %v756, 4294901760
    %758 = vmatpush1.msra.mxu0 %v757
    %759 = vmatprep.subr.mxu0 0.0
    %v760 = vand.u32 %v579, 4294901760
    %v761 = vsub.f32 %v579, %v760
    %v762 = vand.u32 %v761, 4294901760
    %v763 = vsub.f32 %v761, %v762
    %v764 = vand.u32 %v763, 4294901760
    %765 = vmatpush1.msra.mxu0 %v764
    %766 = vmatprep.subr.mxu0 0.0
    %767 = vmatpush2.msra.mxu0 0.0
    %768 = vmatprep.subr.mxu0 0.0
    %769 = vmatpush2.msra.mxu0 0.0
    %770 = vmatprep.subr.mxu0 0.0
    %771 = vmatpush2.msra.mxu0 0.0
    %772 = vmatprep.subr.mxu0 0.0
    %773 = vmatpush2.msra.mxu0 0.0
    %774 = vmatprep.subr.mxu0 0.0
    %775 = vmatpush2.msra.mxu0 0.0
    %776 = vmatprep.subr.mxu0 0.0
    %777 = vmatpush2.msra.mxu0 0.0
    %778 = vmatprep.subr.mxu0 0.0
    %779 = vmatpush2.msra.mxu0 0.0
    %780 = vmatprep.subr.mxu0 0.0
    %781 = vmatpush2.msra.mxu0 0.0
    %782 = vmatprep.subr.mxu0 0.0
    %783 = vmatpush2.msra.mxu0 0.0
    %784 = vmatprep.subr.mxu0 0.0
    %785 = vmatpush2.msra.mxu0 0.0
    %786 = vmatprep.subr.mxu0 0.0
    %787 = vmatpush2.msra.mxu0 0.0
    %788 = vmatprep.subr.mxu0 0.0
    %789 = vmatpush2.msra.mxu0 0.0
    %790 = vmatprep.subr.mxu0 0.0
    %791 = vmatpush2.msra.mxu0 0.0
    %792 = vmatprep.subr.mxu0 0.0
    %793 = vmatpush2.msra.mxu0 0.0
    %794 = vmatprep.subr.mxu0 0.0
    %795 = vmatpush2.msra.mxu0 0.0
    %796 = vmatprep.subr.mxu0 0.0
    %797 = vmatpush2.msra.mxu0 0.0
    %798 = vmatprep.mubr.f32.mxu0 0.0
    %v799 = vand.u32 %v596, 4294901760
    %800 = vmatmul.mubr.f32.gmra.mxu0 %v799
    %v801 = vpop.f32.mrf.mxu0
    %v802 = vadd.f32 %v681, %v801
    %v803 = vpop.f32.mrf.mxu0
    %804 = vmatprep.mubr.f32.mxu0 0.0
    %v805 = vand.u32 %v599, 4294901760
    %806 = vmatmul.mubr.f32.gmra.mxu0 %v805
    %v807 = vpop.f32.mrf.mxu0
    %v808 = vadd.f32 %v691, %v807
    %v809 = vpop.f32.mrf.mxu0
    %810 = vdwg.mxu0
    %811 = vmatprep.subr.mxu0 0.0
    %812 = vmatpush1.msra.mxu0 0.0
    %813 = vmatprep.subr.mxu0 0.0
    %814 = vmatpush1.msra.mxu0 0.0
    %815 = vmatprep.subr.mxu0 0.0
    %816 = vmatpush1.msra.mxu0 0.0
    %817 = vmatprep.subr.mxu0 0.0
    %818 = vmatpush1.msra.mxu0 0.0
    %819 = vmatprep.subr.mxu0 0.0
    %820 = vmatpush1.msra.mxu0 0.0
    %821 = vmatprep.subr.mxu0 0.0
    %822 = vmatpush1.msra.mxu0 0.0
    %823 = vmatprep.subr.mxu0 0.0
    %824 = vmatpush1.msra.mxu0 0.0
    %825 = vmatprep.subr.mxu0 0.0
    %826 = vmatpush1.msra.mxu0 0.0
    %827 = vmatprep.subr.mxu0 0.0
    %v828 = vand.u32 %v586, 4294901760
    %v829 = vsub.f32 %v586, %v828
    %830 = vmatpush1.msra.mxu0 %v829
    %831 = vmatprep.subr.mxu0 0.0
    %v832 = vand.u32 %v585, 4294901760
    %v833 = vsub.f32 %v585, %v832
    %834 = vmatpush1.msra.mxu0 %v833
    %835 = vmatprep.subr.mxu0 0.0
    %v836 = vand.u32 %v584, 4294901760
    %v837 = vsub.f32 %v584, %v836
    %838 = vmatpush1.msra.mxu0 %v837
    %839 = vmatprep.subr.mxu0 0.0
    %v840 = vand.u32 %v583, 4294901760
    %v841 = vsub.f32 %v583, %v840
    %842 = vmatpush1.msra.mxu0 %v841
    %843 = vmatprep.subr.mxu0 0.0
    %v844 = vand.u32 %v582, 4294901760
    %v845 = vsub.f32 %v582, %v844
    %846 = vmatpush1.msra.mxu0 %v845
    %847 = vmatprep.subr.mxu0 0.0
    %v848 = vand.u32 %v581, 4294901760
    %v849 = vsub.f32 %v581, %v848
    %850 = vmatpush1.msra.mxu0 %v849
    %851 = vmatprep.subr.mxu0 0.0
    %v852 = vand.u32 %v580, 4294901760
    %v853 = vsub.f32 %v580, %v852
    %854 = vmatpush1.msra.mxu0 %v853
    %855 = vmatprep.subr.mxu0 0.0
    %v856 = vand.u32 %v579, 4294901760
    %v857 = vsub.f32 %v579, %v856
    %858 = vmatpush1.msra.mxu0 %v857
    %859 = vmatprep.subr.mxu0 0.0
    %860 = vmatpush2.msra.mxu0 0.0
    %861 = vmatprep.subr.mxu0 0.0
    %862 = vmatpush2.msra.mxu0 0.0
    %863 = vmatprep.subr.mxu0 0.0
    %864 = vmatpush2.msra.mxu0 0.0
    %865 = vmatprep.subr.mxu0 0.0
    %866 = vmatpush2.msra.mxu0 0.0
    %867 = vmatprep.subr.mxu0 0.0
    %868 = vmatpush2.msra.mxu0 0.0
    %869 = vmatprep.subr.mxu0 0.0
    %870 = vmatpush2.msra.mxu0 0.0
    %871 = vmatprep.subr.mxu0 0.0
    %872 = vmatpush2.msra.mxu0 0.0
    %873 = vmatprep.subr.mxu0 0.0
    %874 = vmatpush2.msra.mxu0 0.0
    %875 = vmatprep.subr.mxu0 0.0
    %876 = vmatpush2.msra.mxu0 0.0
    %877 = vmatprep.subr.mxu0 0.0
    %878 = vmatpush2.msra.mxu0 0.0
    %879 = vmatprep.subr.mxu0 0.0
    %880 = vmatpush2.msra.mxu0 0.0
    %881 = vmatprep.subr.mxu0 0.0
    %882 = vmatpush2.msra.mxu0 0.0
    %883 = vmatprep.subr.mxu0 0.0
    %884 = vmatpush2.msra.mxu0 0.0
    %885 = vmatprep.subr.mxu0 0.0
    %886 = vmatpush2.msra.mxu0 0.0
    %887 = vmatprep.subr.mxu0 0.0
    %888 = vmatpush2.msra.mxu0 0.0
    %889 = vmatprep.subr.mxu0 0.0
    %890 = vmatpush2.msra.mxu0 0.0
    %891 = vmatprep.mubr.f32.mxu0 0.0
    %v892 = vand.u32 %v596, 4294901760
    %v893 = vsub.f32 %v596, %v892
    %894 = vmatmul.mubr.f32.gmra.mxu0 %v893
    %v895 = vpop.f32.mrf.mxu0
    %v896 = vadd.f32 %v802, %v895
    %v897 = vpop.f32.mrf.mxu0
    %898 = vmatprep.mubr.f32.mxu0 0.0
    %v899 = vand.u32 %v599, 4294901760
    %v900 = vsub.f32 %v599, %v899
    %901 = vmatmul.mubr.f32.gmra.mxu0 %v900
    %v902 = vpop.f32.mrf.mxu0
    %v903 = vadd.f32 %v808, %v902
    %v904 = vpop.f32.mrf.mxu0
    %905 = vdwg.mxu0
    %906 = vmatprep.subr.mxu0 0.0
    %907 = vmatpush1.msra.mxu0 0.0
    %908 = vmatprep.subr.mxu0 0.0
    %909 = vmatpush1.msra.mxu0 0.0
    %910 = vmatprep.subr.mxu0 0.0
    %911 = vmatpush1.msra.mxu0 0.0
    %912 = vmatprep.subr.mxu0 0.0
    %913 = vmatpush1.msra.mxu0 0.0
    %914 = vmatprep.subr.mxu0 0.0
    %915 = vmatpush1.msra.mxu0 0.0
    %916 = vmatprep.subr.mxu0 0.0
    %917 = vmatpush1.msra.mxu0 0.0
    %918 = vmatprep.subr.mxu0 0.0
    %919 = vmatpush1.msra.mxu0 0.0
    %920 = vmatprep.subr.mxu0 0.0
    %921 = vmatpush1.msra.mxu0 0.0
    %922 = vmatprep.subr.mxu0 0.0
    %v923 = vand.u32 %v586, 4294901760
    %924 = vmatpush1.msra.mxu0 %v923
    %925 = vmatprep.subr.mxu0 0.0
    %v926 = vand.u32 %v585, 4294901760
    %927 = vmatpush1.msra.mxu0 %v926
    %928 = vmatprep.subr.mxu0 0.0
    %v929 = vand.u32 %v584, 4294901760
    %930 = vmatpush1.msra.mxu0 %v929
    %931 = vmatprep.subr.mxu0 0.0
    %v932 = vand.u32 %v583, 4294901760
    %933 = vmatpush1.msra.mxu0 %v932
    %934 = vmatprep.subr.mxu0 0.0
    %v935 = vand.u32 %v582, 4294901760
    %936 = vmatpush1.msra.mxu0 %v935
    %937 = vmatprep.subr.mxu0 0.0
    %v938 = vand.u32 %v581, 4294901760
    %939 = vmatpush1.msra.mxu0 %v938
    %940 = vmatprep.subr.mxu0 0.0
    %v941 = vand.u32 %v580, 4294901760
    %942 = vmatpush1.msra.mxu0 %v941
    %943 = vmatprep.subr.mxu0 0.0
    %v944 = vand.u32 %v579, 4294901760
    %945 = vmatpush1.msra.mxu0 %v944
    %946 = vmatprep.subr.mxu0 0.0
    %947 = vmatpush2.msra.mxu0 0.0
    %948 = vmatprep.subr.mxu0 0.0
    %949 = vmatpush2.msra.mxu0 0.0
    %950 = vmatprep.subr.mxu0 0.0
    %951 = vmatpush2.msra.mxu0 0.0
    %952 = vmatprep.subr.mxu0 0.0
    %953 = vmatpush2.msra.mxu0 0.0
    %954 = vmatprep.subr.mxu0 0.0
    %955 = vmatpush2.msra.mxu0 0.0
    %956 = vmatprep.subr.mxu0 0.0
    %957 = vmatpush2.msra.mxu0 0.0
    %958 = vmatprep.subr.mxu0 0.0
    %959 = vmatpush2.msra.mxu0 0.0
    %960 = vmatprep.subr.mxu0 0.0
    %961 = vmatpush2.msra.mxu0 0.0
    %962 = vmatprep.subr.mxu0 0.0
    %963 = vmatpush2.msra.mxu0 0.0
    %964 = vmatprep.subr.mxu0 0.0
    %965 = vmatpush2.msra.mxu0 0.0
    %966 = vmatprep.subr.mxu0 0.0
    %967 = vmatpush2.msra.mxu0 0.0
    %968 = vmatprep.subr.mxu0 0.0
    %969 = vmatpush2.msra.mxu0 0.0
    %970 = vmatprep.subr.mxu0 0.0
    %971 = vmatpush2.msra.mxu0 0.0
    %972 = vmatprep.subr.mxu0 0.0
    %973 = vmatpush2.msra.mxu0 0.0
    %974 = vmatprep.subr.mxu0 0.0
    %975 = vmatpush2.msra.mxu0 0.0
    %976 = vmatprep.subr.mxu0 0.0
    %977 = vmatpush2.msra.mxu0 0.0
    %978 = vmatprep.mubr.f32.mxu0 0.0
    %v979 = vand.u32 %v596, 4294901760
    %v980 = vsub.f32 %v596, %v979
    %v981 = vand.u32 %v980, 4294901760
    %982 = vmatmul.mubr.f32.gmra.mxu0 %v981
    %v983 = vpop.f32.mrf.mxu0
    %v984 = vadd.f32 %v896, %v983
    %v985 = vpop.f32.mrf.mxu0
    %986 = vmatprep.mubr.f32.mxu0 0.0
    %v987 = vand.u32 %v599, 4294901760
    %v988 = vsub.f32 %v599, %v987
    %v989 = vand.u32 %v988, 4294901760
    %990 = vmatmul.mubr.f32.gmra.mxu0 %v989
    %v991 = vpop.f32.mrf.mxu0
    %v992 = vadd.f32 %v903, %v991
    %v993 = vpop.f32.mrf.mxu0
    %994 = vdwg.mxu0
    %995 = vmatprep.subr.mxu0 0.0
    %996 = vmatpush1.msra.mxu0 0.0
    %997 = vmatprep.subr.mxu0 0.0
    %998 = vmatpush1.msra.mxu0 0.0
    %999 = vmatprep.subr.mxu0 0.0
    %1000 = vmatpush1.msra.mxu0 0.0
    %1001 = vmatprep.subr.mxu0 0.0
    %1002 = vmatpush1.msra.mxu0 0.0
    %1003 = vmatprep.subr.mxu0 0.0
    %1004 = vmatpush1.msra.mxu0 0.0
    %1005 = vmatprep.subr.mxu0 0.0
    %1006 = vmatpush1.msra.mxu0 0.0
    %1007 = vmatprep.subr.mxu0 0.0
    %1008 = vmatpush1.msra.mxu0 0.0
    %1009 = vmatprep.subr.mxu0 0.0
    %1010 = vmatpush1.msra.mxu0 0.0
    %1011 = vmatprep.subr.mxu0 0.0
    %v1012 = vand.u32 %v586, 4294901760
    %v1013 = vsub.f32 %v586, %v1012
    %v1014 = vand.u32 %v1013, 4294901760
    %1015 = vmatpush1.msra.mxu0 %v1014
    %1016 = vmatprep.subr.mxu0 0.0
    %v1017 = vand.u32 %v585, 4294901760
    %v1018 = vsub.f32 %v585, %v1017
    %v1019 = vand.u32 %v1018, 4294901760
    %1020 = vmatpush1.msra.mxu0 %v1019
    %1021 = vmatprep.subr.mxu0 0.0
    %v1022 = vand.u32 %v584, 4294901760
    %v1023 = vsub.f32 %v584, %v1022
    %v1024 = vand.u32 %v1023, 4294901760
    %1025 = vmatpush1.msra.mxu0 %v1024
    %1026 = vmatprep.subr.mxu0 0.0
    %v1027 = vand.u32 %v583, 4294901760
    %v1028 = vsub.f32 %v583, %v1027
    %v1029 = vand.u32 %v1028, 4294901760
    %1030 = vmatpush1.msra.mxu0 %v1029
    %1031 = vmatprep.subr.mxu0 0.0
    %v1032 = vand.u32 %v582, 4294901760
    %v1033 = vsub.f32 %v582, %v1032
    %v1034 = vand.u32 %v1033, 4294901760
    %1035 = vmatpush1.msra.mxu0 %v1034
    %1036 = vmatprep.subr.mxu0 0.0
    %v1037 = vand.u32 %v581, 4294901760
    %v1038 = vsub.f32 %v581, %v1037
    %v1039 = vand.u32 %v1038, 4294901760
    %1040 = vmatpush1.msra.mxu0 %v1039
    %1041 = vmatprep.subr.mxu0 0.0
    %v1042 = vand.u32 %v580, 4294901760
    %v1043 = vsub.f32 %v580, %v1042
    %v1044 = vand.u32 %v1043, 4294901760
    %1045 = vmatpush1.msra.mxu0 %v1044
    %1046 = vmatprep.subr.mxu0 0.0
    %v1047 = vand.u32 %v579, 4294901760
    %v1048 = vsub.f32 %v579, %v1047
    %v1049 = vand.u32 %v1048, 4294901760
    %1050 = vmatpush1.msra.mxu0 %v1049
    %1051 = vmatprep.subr.mxu0 0.0
    %1052 = vmatpush2.msra.mxu0 0.0
    %1053 = vmatprep.subr.mxu0 0.0
    %1054 = vmatpush2.msra.mxu0 0.0
    %1055 = vmatprep.subr.mxu0 0.0
    %1056 = vmatpush2.msra.mxu0 0.0
    %1057 = vmatprep.subr.mxu0 0.0
    %1058 = vmatpush2.msra.mxu0 0.0
    %1059 = vmatprep.subr.mxu0 0.0
    %1060 = vmatpush2.msra.mxu0 0.0
    %1061 = vmatprep.subr.mxu0 0.0
    %1062 = vmatpush2.msra.mxu0 0.0
    %1063 = vmatprep.subr.mxu0 0.0
    %1064 = vmatpush2.msra.mxu0 0.0
    %1065 = vmatprep.subr.mxu0 0.0
    %1066 = vmatpush2.msra.mxu0 0.0
    %1067 = vmatprep.subr.mxu0 0.0
    %1068 = vmatpush2.msra.mxu0 0.0
    %1069 = vmatprep.subr.mxu0 0.0
    %1070 = vmatpush2.msra.mxu0 0.0
    %1071 = vmatprep.subr.mxu0 0.0
    %1072 = vmatpush2.msra.mxu0 0.0
    %1073 = vmatprep.subr.mxu0 0.0
    %1074 = vmatpush2.msra.mxu0 0.0
    %1075 = vmatprep.subr.mxu0 0.0
    %1076 = vmatpush2.msra.mxu0 0.0
    %1077 = vmatprep.subr.mxu0 0.0
    %1078 = vmatpush2.msra.mxu0 0.0
    %1079 = vmatprep.subr.mxu0 0.0
    %1080 = vmatpush2.msra.mxu0 0.0
    %1081 = vmatprep.subr.mxu0 0.0
    %1082 = vmatpush2.msra.mxu0 0.0
    %1083 = vmatprep.mubr.f32.mxu0 0.0
    %v1084 = vand.u32 %v596, 4294901760
    %1085 = vmatmul.mubr.f32.gmra.mxu0 %v1084
    %v1086 = vpop.f32.mrf.mxu0
    %v1087 = vadd.f32 %v984, %v1086
    %v1088 = vpop.f32.mrf.mxu0
    %1089 = vmatprep.mubr.f32.mxu0 0.0
    %v1090 = vand.u32 %v599, 4294901760
    %1091 = vmatmul.mubr.f32.gmra.mxu0 %v1090
    %v1092 = vpop.f32.mrf.mxu0
    %v1093 = vadd.f32 %v992, %v1092
    %v1094 = vpop.f32.mrf.mxu0
    %1095 = vdwg.mxu0
    %1096 = vmatprep.subr.mxu0 0.0
    %1097 = vmatpush1.msra.mxu0 0.0
    %1098 = vmatprep.subr.mxu0 0.0
    %1099 = vmatpush1.msra.mxu0 0.0
    %1100 = vmatprep.subr.mxu0 0.0
    %1101 = vmatpush1.msra.mxu0 0.0
    %1102 = vmatprep.subr.mxu0 0.0
    %1103 = vmatpush1.msra.mxu0 0.0
    %1104 = vmatprep.subr.mxu0 0.0
    %1105 = vmatpush1.msra.mxu0 0.0
    %1106 = vmatprep.subr.mxu0 0.0
    %1107 = vmatpush1.msra.mxu0 0.0
    %1108 = vmatprep.subr.mxu0 0.0
    %1109 = vmatpush1.msra.mxu0 0.0
    %1110 = vmatprep.subr.mxu0 0.0
    %1111 = vmatpush1.msra.mxu0 0.0
    %1112 = vmatprep.subr.mxu0 0.0
    %v1113 = vand.u32 %v586, 4294901760
    %1114 = vmatpush1.msra.mxu0 %v1113
    %1115 = vmatprep.subr.mxu0 0.0
    %v1116 = vand.u32 %v585, 4294901760
    %1117 = vmatpush1.msra.mxu0 %v1116
    %1118 = vmatprep.subr.mxu0 0.0
    %v1119 = vand.u32 %v584, 4294901760
    %1120 = vmatpush1.msra.mxu0 %v1119
    %1121 = vmatprep.subr.mxu0 0.0
    %v1122 = vand.u32 %v583, 4294901760
    %1123 = vmatpush1.msra.mxu0 %v1122
    %1124 = vmatprep.subr.mxu0 0.0
    %v1125 = vand.u32 %v582, 4294901760
    %1126 = vmatpush1.msra.mxu0 %v1125
    %1127 = vmatprep.subr.mxu0 0.0
    %v1128 = vand.u32 %v581, 4294901760
    %1129 = vmatpush1.msra.mxu0 %v1128
    %1130 = vmatprep.subr.mxu0 0.0
    %v1131 = vand.u32 %v580, 4294901760
    %1132 = vmatpush1.msra.mxu0 %v1131
    %1133 = vmatprep.subr.mxu0 0.0
    %v1134 = vand.u32 %v579, 4294901760
    %1135 = vmatpush1.msra.mxu0 %v1134
    %1136 = vmatprep.subr.mxu0 0.0
    %1137 = vmatpush2.msra.mxu0 0.0
    %1138 = vmatprep.subr.mxu0 0.0
    %1139 = vmatpush2.msra.mxu0 0.0
    %1140 = vmatprep.subr.mxu0 0.0
    %1141 = vmatpush2.msra.mxu0 0.0
    %1142 = vmatprep.subr.mxu0 0.0
    %1143 = vmatpush2.msra.mxu0 0.0
    %1144 = vmatprep.subr.mxu0 0.0
    %1145 = vmatpush2.msra.mxu0 0.0
    %1146 = vmatprep.subr.mxu0 0.0
    %1147 = vmatpush2.msra.mxu0 0.0
    %1148 = vmatprep.subr.mxu0 0.0
    %1149 = vmatpush2.msra.mxu0 0.0
    %1150 = vmatprep.subr.mxu0 0.0
    %1151 = vmatpush2.msra.mxu0 0.0
    %1152 = vmatprep.subr.mxu0 0.0
    %1153 = vmatpush2.msra.mxu0 0.0
    %1154 = vmatprep.subr.mxu0 0.0
    %1155 = vmatpush2.msra.mxu0 0.0
    %1156 = vmatprep.subr.mxu0 0.0
    %1157 = vmatpush2.msra.mxu0 0.0
    %1158 = vmatprep.subr.mxu0 0.0
    %1159 = vmatpush2.msra.mxu0 0.0
    %1160 = vmatprep.subr.mxu0 0.0
    %1161 = vmatpush2.msra.mxu0 0.0
    %1162 = vmatprep.subr.mxu0 0.0
    %1163 = vmatpush2.msra.mxu0 0.0
    %1164 = vmatprep.subr.mxu0 0.0
    %1165 = vmatpush2.msra.mxu0 0.0
    %1166 = vmatprep.subr.mxu0 0.0
    %1167 = vmatpush2.msra.mxu0 0.0
    %1168 = vmatprep.mubr.f32.mxu0 0.0
    %v1169 = vand.u32 %v596, 4294901760
    %1170 = vmatmul.mubr.f32.gmra.mxu0 %v1169
    %v1171 = vpop.f32.mrf.mxu0
    %v1172 = vadd.f32 %v1087, %v1171
    %v1173 = vpop.f32.mrf.mxu0
    %1174 = vmatprep.mubr.f32.mxu0 0.0
    %v1175 = vand.u32 %v599, 4294901760
    %1176 = vmatmul.mubr.f32.gmra.mxu0 %v1175
    %v1177 = vpop.f32.mrf.mxu0
    %v1178 = vadd.f32 %v1093, %v1177
    %v1179 = vpop.f32.mrf.mxu0
    %1180 = vdwg.mxu0
    %1181 = vst.msk [vmem:[#allocation2] sm:$0xff] %vm34, %v1172
    %1182 = vst.msk [vmem:[#allocation2 + $0x8] sm:$0xff] %vm34, %v1178
    // Predicated region
    $region22: #{tpu_custom_call.1} parent=1 // pred_check
      _
    $region23: #{tpu_custom_call.1} parent=1 // pred_check_branch
      %1184 = sbr.rel (0) target = $region25
    $region24: #{tpu_custom_call.1} parent=1 // pred_region
      %s1186 = ssub.s32 256, 256
      %1187 = vsyncadd [#allocation3], %s1186
      %s1188 = sshll.u32 [#allocation2], 4
      %s1189 = int_to_ptr.vmem [resolvable:$true] %s1188
      %1194 = dma.vmem_to_hbm [thread:$0]  %s1189, 256, %s5, [#allocation3], 128, 128, 8
    $region25: #{tpu_custom_call.1} parent=1 // pred_fallthru
      _
    // Predicated region
    $region26: #{tpu_custom_call.1} parent=1 // pred_check
      _
    $region27: #{tpu_custom_call.1} parent=1 // pred_check_branch
      %1196 = sbr.rel (0) target = $region29
    $region28: #{tpu_custom_call.1} parent=1 // pred_region
      %1197 = dma.done [#allocation3], 256
    $region29: #{tpu_custom_call.1} parent=1 // pred_fallthru
      _
    %1198 = vsyncpa [#allocation3], 1

// kernel: tpu_custom_call.1
$region0: #{tpu_custom_call.1}
  #allocation0 [shape = 'u32[]', space=smem, size = 0x4, offset = 0x4, fixed_abs, tag = 'smem constant byte address 0x4 - core index']
  #allocation1 [shape = 'u32[144,128]{1,0:T(1,128)}', space=vmem, size = 0x12000, scoped, tag = 'internal scratch']
  %s0 = inlined_call_operand.vmem [shape: f32[16,32], index: 0, kind: input, shape index: {}]
  %s1 = inlined_call_operand.vmem [shape: f32[32,64], index: 1, kind: input, shape index: {}]
  %s2 = inlined_call_operand.vmem [shape: f32[1,64], index: 2, kind: input, shape index: {}]
  %s3 = inlined_call_operand.vmem [shape: f32[64,32], index: 3, kind: input, shape index: {}]
  %s4 = inlined_call_operand.vmem [shape: f32[1,32], index: 4, kind: input, shape index: {}]
  %s5 = inlined_call_operand.hbm [shape: f32[16,32], index: 5, kind: output, shape index: {}]
  %s6 = sld [smem:[#allocation0]]
  $region30: #{tpu_custom_call.1} parent=0
    _
  %s8 = ssub.s32 1, %s6
  %s9 = scalar_select 0, %s8, %s6
  $region1: #{tpu_custom_call.1} parent=0
    #allocation2 [shape = 'u8[8192]{0}', space=vmem, size = 0x2000, scoped, tag = 'output window, operand 0, single buffered']
    #allocation3 [shape = 's32[1]{0}', space=sflag, size = 0x4, scoped, tag = 'scoped memory for tpu_custom_call.1']
    %10 = vsyncpa [#allocation3], 0
    // Predicated region
    $region2: #{tpu_custom_call.1} parent=1 // pred_check
      _
    $region3: #{tpu_custom_call.1} parent=1 // pred_check_branch
      %12 = sbr.rel (0) target = $region5
    $region4: #{tpu_custom_call.1} parent=1 // pred_region
      _
    $region5: #{tpu_custom_call.1} parent=1 // pred_fallthru
      _
    // Predicated region
    $region6: #{tpu_custom_call.1} parent=1 // pred_check
      _
    $region7: #{tpu_custom_call.1} parent=1 // pred_check_branch
      %14 = sbr.rel (0) target = $region9
    $region8: #{tpu_custom_call.1} parent=1 // pred_region
      _
    $region9: #{tpu_custom_call.1} parent=1 // pred_fallthru
      _
    // Predicated region
    $region10: #{tpu_custom_call.1} parent=1 // pred_check
      _
    $region11: #{tpu_custom_call.1} parent=1 // pred_check_branch
      %16 = sbr.rel (0) target = $region13
    $region12: #{tpu_custom_call.1} parent=1 // pred_region
      _
    $region13: #{tpu_custom_call.1} parent=1 // pred_fallthru
      _
    // Predicated region
    $region14: #{tpu_custom_call.1} parent=1 // pred_check
      _
    $region15: #{tpu_custom_call.1} parent=1 // pred_check_branch
      %18 = sbr.rel (0) target = $region17
    $region16: #{tpu_custom_call.1} parent=1 // pred_region
      _
    $region17: #{tpu_custom_call.1} parent=1 // pred_fallthru
      _
    // Predicated region
    $region18: #{tpu_custom_call.1} parent=1 // pred_check
      _
    $region19: #{tpu_custom_call.1} parent=1 // pred_check_branch
      %20 = sbr.rel (0) target = $region21
    $region20: #{tpu_custom_call.1} parent=1 // pred_region
      _
    $region21: #{tpu_custom_call.1} parent=1 // pred_fallthru
      _
    %v21 = vld [vmem:[%s0] sm:$0xff]
    %v22 = vld [vmem:[%s0 + $0x8] sm:$0xff]
    %v23 = vld [vmem:[%s1] sm:$0xff]
    %v24 = vld [vmem:[%s1 + $0x8] sm:$0xff]
    %v25 = vld [vmem:[%s1 + $0x10] sm:$0xff]
    %v26 = vld [vmem:[%s1 + $0x18] sm:$0xff]
    %v27 = vld [vmem:[%s2] sm:$0x1]
    %v29 = vlaneseq
    %v30 = vshrl.u32 %v29, 7
    %v31 = vsub.s32 0, %v30
    %v32 = vrot.slane %v27, %v31
    %vm34 = vcmask 261120
    %v36 = vsel %vm34, %v21, 0
    %v39 = vsel %vm34, %v22, 0
    %41 = vmatprep.subr.mxu0 0.0
    %42 = vmatpush1.msra.mxu0 0.0
    %43 = vmatprep.subr.mxu0 0.0
    %44 = vmatpush1.msra.mxu0 0.0
    %45 = vmatprep.subr.mxu0 0.0
    %46 = vmatpush1.msra.mxu0 0.0
    %47 = vmatprep.subr.mxu0 0.0
    %48 = vmatpush1.msra.mxu0 0.0
    %49 = vmatprep.subr.mxu0 0.0
    %50 = vmatpush1.msra.mxu0 0.0
    %51 = vmatprep.subr.mxu0 0.0
    %52 = vmatpush1.msra.mxu0 0.0
    %53 = vmatprep.subr.mxu0 0.0
    %54 = vmatpush1.msra.mxu0 0.0
    %55 = vmatprep.subr.mxu0 0.0
    %56 = vmatpush1.msra.mxu0 0.0
    %57 = vmatprep.subr.mxu0 0.0
    %58 = vmatpush1.msra.mxu0 0.0
    %59 = vmatprep.subr.mxu0 0.0
    %60 = vmatpush1.msra.mxu0 0.0
    %61 = vmatprep.subr.mxu0 0.0
    %62 = vmatpush1.msra.mxu0 0.0
    %63 = vmatprep.subr.mxu0 0.0
    %64 = vmatpush1.msra.mxu0 0.0
    %65 = vmatprep.subr.mxu0 0.0
    %v66 = vand.u32 %v26, 4294901760
    %67 = vmatpush1.msra.mxu0 %v66
    %68 = vmatprep.subr.mxu0 0.0
    %v69 = vand.u32 %v25, 4294901760
    %70 = vmatpush1.msra.mxu0 %v69
    %71 = vmatprep.subr.mxu0 0.0
    %v72 = vand.u32 %v24, 4294901760
    %73 = vmatpush1.msra.mxu0 %v72
    %74 = vmatprep.subr.mxu0 0.0
    %v75 = vand.u32 %v23, 4294901760
    %76 = vmatpush1.msra.mxu0 %v75
    %77 = vmatprep.subr.mxu0 0.0
    %78 = vmatpush2.msra.mxu0 0.0
    %79 = vmatprep.subr.mxu0 0.0
    %80 = vmatpush2.msra.mxu0 0.0
    %81 = vmatprep.subr.mxu0 0.0
    %82 = vmatpush2.msra.mxu0 0.0
    %83 = vmatprep.subr.mxu0 0.0
    %84 = vmatpush2.msra.mxu0 0.0
    %85 = vmatprep.subr.mxu0 0.0
    %86 = vmatpush2.msra.mxu0 0.0
    %87 = vmatprep.subr.mxu0 0.0
    %88 = vmatpush2.msra.mxu0 0.0
    %89 = vmatprep.subr.mxu0 0.0
    %90 = vmatpush2.msra.mxu0 0.0
    %91 = vmatprep.subr.mxu0 0.0
    %92 = vmatpush2.msra.mxu0 0.0
    %93 = vmatprep.subr.mxu0 0.0
    %94 = vmatpush2.msra.mxu0 0.0
    %95 = vmatprep.subr.mxu0 0.0
    %96 = vmatpush2.msra.mxu0 0.0
    %97 = vmatprep.subr.mxu0 0.0
    %98 = vmatpush2.msra.mxu0 0.0
    %99 = vmatprep.subr.mxu0 0.0
    %100 = vmatpush2.msra.mxu0 0.0
    %101 = vmatprep.subr.mxu0 0.0
    %102 = vmatpush2.msra.mxu0 0.0
    %103 = vmatprep.subr.mxu0 0.0
    %104 = vmatpush2.msra.mxu0 0.0
    %105 = vmatprep.subr.mxu0 0.0
    %106 = vmatpush2.msra.mxu0 0.0
    %107 = vmatprep.subr.mxu0 0.0
    %108 = vmatpush2.msra.mxu0 0.0
    %109 = vmatprep.mubr.f32.mxu0 0.0
    %v110 = vand.u32 %v36, 4294901760
    %v111 = vsub.f32 %v36, %v110
    %v112 = vand.u32 %v111, 4294901760
    %v113 = vsub.f32 %v111, %v112
    %v114 = vand.u32 %v113, 4294901760
    %115 = vmatmul.mubr.f32.gmra.mxu0 %v114
    %v116 = vpop.f32.mrf.mxu0
    %v117 = vadd.f32 %v32, %v116
    %v118 = vpop.f32.mrf.mxu0
    %119 = vmatprep.mubr.f32.mxu0 0.0
    %v120 = vand.u32 %v39, 4294901760
    %v121 = vsub.f32 %v39, %v120
    %v122 = vand.u32 %v121, 4294901760
    %v123 = vsub.f32 %v121, %v122
    %v124 = vand.u32 %v123, 4294901760
    %125 = vmatmul.mubr.f32.gmra.mxu0 %v124
    %v126 = vpop.f32.mrf.mxu0
    %v127 = vadd.f32 %v32, %v126
    %v128 = vpop.f32.mrf.mxu0
    %129 = vdwg.mxu0
    %130 = vmatprep.subr.mxu0 0.0
    %131 = vmatpush1.msra.mxu0 0.0
    %132 = vmatprep.subr.mxu0 0.0
    %133 = vmatpush1.msra.mxu0 0.0
    %134 = vmatprep.subr.mxu0 0.0
    %135 = vmatpush1.msra.mxu0 0.0
    %136 = vmatprep.subr.mxu0 0.0
    %137 = vmatpush1.msra.mxu0 0.0
    %138 = vmatprep.subr.mxu0 0.0
    %139 = vmatpush1.msra.mxu0 0.0
    %140 = vmatprep.subr.mxu0 0.0
    %141 = vmatpush1.msra.mxu0 0.0
    %142 = vmatprep.subr.mxu0 0.0
    %143 = vmatpush1.msra.mxu0 0.0
    %144 = vmatprep.subr.mxu0 0.0
    %145 = vmatpush1.msra.mxu0 0.0
    %146 = vmatprep.subr.mxu0 0.0
    %147 = vmatpush1.msra.mxu0 0.0
    %148 = vmatprep.subr.mxu0 0.0
    %149 = vmatpush1.msra.mxu0 0.0
    %150 = vmatprep.subr.mxu0 0.0
    %151 = vmatpush1.msra.mxu0 0.0
    %152 = vmatprep.subr.mxu0 0.0
    %153 = vmatpush1.msra.mxu0 0.0
    %154 = vmatprep.subr.mxu0 0.0
    %v155 = vand.u32 %v26, 4294901760
    %v156 = vsub.f32 %v26, %v155
    %v157 = vand.u32 %v156, 4294901760
    %v158 = vsub.f32 %v156, %v157
    %v159 = vand.u32 %v158, 4294901760
    %160 = vmatpush1.msra.mxu0 %v159
    %161 = vmatprep.subr.mxu0 0.0
    %v162 = vand.u32 %v25, 4294901760
    %v163 = vsub.f32 %v25, %v162
    %v164 = vand.u32 %v163, 4294901760
    %v165 = vsub.f32 %v163, %v164
    %v166 = vand.u32 %v165, 4294901760
    %167 = vmatpush1.msra.mxu0 %v166
    %168 = vmatprep.subr.mxu0 0.0
    %v169 = vand.u32 %v24, 4294901760
    %v170 = vsub.f32 %v24, %v169
    %v171 = vand.u32 %v170, 4294901760
    %v172 = vsub.f32 %v170, %v171
    %v173 = vand.u32 %v172, 4294901760
    %174 = vmatpush1.msra.mxu0 %v173
    %175 = vmatprep.subr.mxu0 0.0
    %v176 = vand.u32 %v23, 4294901760
    %v177 = vsub.f32 %v23, %v176
    %v178 = vand.u32 %v177, 4294901760
    %v179 = vsub.f32 %v177, %v178
    %v180 = vand.u32 %v179, 4294901760
    %181 = vmatpush1.msra.mxu0 %v180
    %182 = vmatprep.subr.mxu0 0.0
    %183 = vmatpush2.msra.mxu0 0.0
    %184 = vmatprep.subr.mxu0 0.0
    %185 = vmatpush2.msra.mxu0 0.0
    %186 = vmatprep.subr.mxu0 0.0
    %187 = vmatpush2.msra.mxu0 0.0
    %188 = vmatprep.subr.mxu0 0.0
    %189 = vmatpush2.msra.mxu0 0.0
    %190 = vmatprep.subr.mxu0 0.0
    %191 = vmatpush2.msra.mxu0 0.0
    %192 = vmatprep.subr.mxu0 0.0
    %193 = vmatpush2.msra.mxu0 0.0
    %194 = vmatprep.subr.mxu0 0.0
    %195 = vmatpush2.msra.mxu0 0.0
    %196 = vmatprep.subr.mxu0 0.0
    %197 = vmatpush2.msra.mxu0 0.0
    %198 = vmatprep.subr.mxu0 0.0
    %199 = vmatpush2.msra.mxu0 0.0
    %200 = vmatprep.subr.mxu0 0.0
    %201 = vmatpush2.msra.mxu0 0.0
    %202 = vmatprep.subr.mxu0 0.0
    %203 = vmatpush2.msra.mxu0 0.0
    %204 = vmatprep.subr.mxu0 0.0
    %205 = vmatpush2.msra.mxu0 0.0
    %206 = vmatprep.subr.mxu0 0.0
    %207 = vmatpush2.msra.mxu0 0.0
    %208 = vmatprep.subr.mxu0 0.0
    %209 = vmatpush2.msra.mxu0 0.0
    %210 = vmatprep.subr.mxu0 0.0
    %211 = vmatpush2.msra.mxu0 0.0
    %212 = vmatprep.subr.mxu0 0.0
    %213 = vmatpush2.msra.mxu0 0.0
    %214 = vmatprep.mubr.f32.mxu0 0.0
    %v215 = vand.u32 %v36, 4294901760
    %216 = vmatmul.mubr.f32.gmra.mxu0 %v215
    %v217 = vpop.f32.mrf.mxu0
    %v218 = vadd.f32 %v117, %v217
    %v219 = vpop.f32.mrf.mxu0
    %220 = vmatprep.mubr.f32.mxu0 0.0
    %v221 = vand.u32 %v39, 4294901760
    %222 = vmatmul.mubr.f32.gmra.mxu0 %v221
    %v223 = vpop.f32.mrf.mxu0
    %v224 = vadd.f32 %v127, %v223
    %v225 = vpop.f32.mrf.mxu0
    %226 = vdwg.mxu0
    %227 = vmatprep.subr.mxu0 0.0
    %228 = vmatpush1.msra.mxu0 0.0
    %229 = vmatprep.subr.mxu0 0.0
    %230 = vmatpush1.msra.mxu0 0.0
    %231 = vmatprep.subr.mxu0 0.0
    %232 = vmatpush1.msra.mxu0 0.0
    %233 = vmatprep.subr.mxu0 0.0
    %234 = vmatpush1.msra.mxu0 0.0
    %235 = vmatprep.subr.mxu0 0.0
    %236 = vmatpush1.msra.mxu0 0.0
    %237 = vmatprep.subr.mxu0 0.0
    %238 = vmatpush1.msra.mxu0 0.0
    %239 = vmatprep.subr.mxu0 0.0
    %240 = vmatpush1.msra.mxu0 0.0
    %241 = vmatprep.subr.mxu0 0.0
    %242 = vmatpush1.msra.mxu0 0.0
    %243 = vmatprep.subr.mxu0 0.0
    %244 = vmatpush1.msra.mxu0 0.0
    %245 = vmatprep.subr.mxu0 0.0
    %246 = vmatpush1.msra.mxu0 0.0
    %247 = vmatprep.subr.mxu0 0.0
    %248 = vmatpush1.msra.mxu0 0.0
    %249 = vmatprep.subr.mxu0 0.0
    %250 = vmatpush1.msra.mxu0 0.0
    %251 = vmatprep.subr.mxu0 0.0
    %v252 = vand.u32 %v26, 4294901760
    %v253 = vsub.f32 %v26, %v252
    %254 = vmatpush1.msra.mxu0 %v253
    %255 = vmatprep.subr.mxu0 0.0
    %v256 = vand.u32 %v25, 4294901760
    %v257 = vsub.f32 %v25, %v256
    %258 = vmatpush1.msra.mxu0 %v257
    %259 = vmatprep.subr.mxu0 0.0
    %v260 = vand.u32 %v24, 4294901760
    %v261 = vsub.f32 %v24, %v260
    %262 = vmatpush1.msra.mxu0 %v261
    %263 = vmatprep.subr.mxu0 0.0
    %v264 = vand.u32 %v23, 4294901760
    %v265 = vsub.f32 %v23, %v264
    %266 = vmatpush1.msra.mxu0 %v265
    %267 = vmatprep.subr.mxu0 0.0
    %268 = vmatpush2.msra.mxu0 0.0
    %269 = vmatprep.subr.mxu0 0.0
    %270 = vmatpush2.msra.mxu0 0.0
    %271 = vmatprep.subr.mxu0 0.0
    %272 = vmatpush2.msra.mxu0 0.0
    %273 = vmatprep.subr.mxu0 0.0
    %274 = vmatpush2.msra.mxu0 0.0
    %275 = vmatprep.subr.mxu0 0.0
    %276 = vmatpush2.msra.mxu0 0.0
    %277 = vmatprep.subr.mxu0 0.0
    %278 = vmatpush2.msra.mxu0 0.0
    %279 = vmatprep.subr.mxu0 0.0
    %280 = vmatpush2.msra.mxu0 0.0
    %281 = vmatprep.subr.mxu0 0.0
    %282 = vmatpush2.msra.mxu0 0.0
    %283 = vmatprep.subr.mxu0 0.0
    %284 = vmatpush2.msra.mxu0 0.0
    %285 = vmatprep.subr.mxu0 0.0
    %286 = vmatpush2.msra.mxu0 0.0
    %287 = vmatprep.subr.mxu0 0.0
    %288 = vmatpush2.msra.mxu0 0.0
    %289 = vmatprep.subr.mxu0 0.0
    %290 = vmatpush2.msra.mxu0 0.0
    %291 = vmatprep.subr.mxu0 0.0
    %292 = vmatpush2.msra.mxu0 0.0
    %293 = vmatprep.subr.mxu0 0.0
    %294 = vmatpush2.msra.mxu0 0.0
    %295 = vmatprep.subr.mxu0 0.0
    %296 = vmatpush2.msra.mxu0 0.0
    %297 = vmatprep.subr.mxu0 0.0
    %298 = vmatpush2.msra.mxu0 0.0
    %299 = vmatprep.mubr.f32.mxu0 0.0
    %v300 = vand.u32 %v36, 4294901760
    %v301 = vsub.f32 %v36, %v300
    %302 = vmatmul.mubr.f32.gmra.mxu0 %v301
    %v303 = vpop.f32.mrf.mxu0
    %v304 = vadd.f32 %v218, %v303
    %v305 = vpop.f32.mrf.mxu0
    %306 = vmatprep.mubr.f32.mxu0 0.0
    %v307 = vand.u32 %v39, 4294901760
    %v308 = vsub.f32 %v39, %v307
    %309 = vmatmul.mubr.f32.gmra.mxu0 %v308
    %v310 = vpop.f32.mrf.mxu0
    %v311 = vadd.f32 %v224, %v310
    %v312 = vpop.f32.mrf.mxu0
    %313 = vdwg.mxu0
    %314 = vmatprep.subr.mxu0 0.0
    %315 = vmatpush1.msra.mxu0 0.0
    %316 = vmatprep.subr.mxu0 0.0
    %317 = vmatpush1.msra.mxu0 0.0
    %318 = vmatprep.subr.mxu0 0.0
    %319 = vmatpush1.msra.mxu0 0.0
    %320 = vmatprep.subr.mxu0 0.0
    %321 = vmatpush1.msra.mxu0 0.0
    %322 = vmatprep.subr.mxu0 0.0
    %323 = vmatpush1.msra.mxu0 0.0
    %324 = vmatprep.subr.mxu0 0.0
    %325 = vmatpush1.msra.mxu0 0.0
    %326 = vmatprep.subr.mxu0 0.0
    %327 = vmatpush1.msra.mxu0 0.0
    %328 = vmatprep.subr.mxu0 0.0
    %329 = vmatpush1.msra.mxu0 0.0
    %330 = vmatprep.subr.mxu0 0.0
    %331 = vmatpush1.msra.mxu0 0.0
    %332 = vmatprep.subr.mxu0 0.0
    %333 = vmatpush1.msra.mxu0 0.0
    %334 = vmatprep.subr.mxu0 0.0
    %335 = vmatpush1.msra.mxu0 0.0
    %336 = vmatprep.subr.mxu0 0.0
    %337 = vmatpush1.msra.mxu0 0.0
    %338 = vmatprep.subr.mxu0 0.0
    %v339 = vand.u32 %v26, 4294901760
    %340 = vmatpush1.msra.mxu0 %v339
    %341 = vmatprep.subr.mxu0 0.0
    %v342 = vand.u32 %v25, 4294901760
    %343 = vmatpush1.msra.mxu0 %v342
    %344 = vmatprep.subr.mxu0 0.0
    %v345 = vand.u32 %v24, 4294901760
    %346 = vmatpush1.msra.mxu0 %v345
    %347 = vmatprep.subr.mxu0 0.0
    %v348 = vand.u32 %v23, 4294901760
    %349 = vmatpush1.msra.mxu0 %v348
    %350 = vmatprep.subr.mxu0 0.0
    %351 = vmatpush2.msra.mxu0 0.0
    %352 = vmatprep.subr.mxu0 0.0
    %353 = vmatpush2.msra.mxu0 0.0
    %354 = vmatprep.subr.mxu0 0.0
    %355 = vmatpush2.msra.mxu0 0.0
    %356 = vmatprep.subr.mxu0 0.0
    %357 = vmatpush2.msra.mxu0 0.0
    %358 = vmatprep.subr.mxu0 0.0
    %359 = vmatpush2.msra.mxu0 0.0
    %360 = vmatprep.subr.mxu0 0.0
    %361 = vmatpush2.msra.mxu0 0.0
    %362 = vmatprep.subr.mxu0 0.0
    %363 = vmatpush2.msra.mxu0 0.0
    %364 = vmatprep.subr.mxu0 0.0
    %365 = vmatpush2.msra.mxu0 0.0
    %366 = vmatprep.subr.mxu0 0.0
    %367 = vmatpush2.msra.mxu0 0.0
    %368 = vmatprep.subr.mxu0 0.0
    %369 = vmatpush2.msra.mxu0 0.0
    %370 = vmatprep.subr.mxu0 0.0
    %371 = vmatpush2.msra.mxu0 0.0
    %372 = vmatprep.subr.mxu0 0.0
    %373 = vmatpush2.msra.mxu0 0.0
    %374 = vmatprep.subr.mxu0 0.0
    %375 = vmatpush2.msra.mxu0 0.0
    %376 = vmatprep.subr.mxu0 0.0
    %377 = vmatpush2.msra.mxu0 0.0
    %378 = vmatprep.subr.mxu0 0.0
    %379 = vmatpush2.msra.mxu0 0.0
    %380 = vmatprep.subr.mxu0 0.0
    %381 = vmatpush2.msra.mxu0 0.0
    %382 = vmatprep.mubr.f32.mxu0 0.0
    %v383 = vand.u32 %v36, 4294901760
    %v384 = vsub.f32 %v36, %v383
    %v385 = vand.u32 %v384, 4294901760
    %386 = vmatmul.mubr.f32.gmra.mxu0 %v385
    %v387 = vpop.f32.mrf.mxu0
    %v388 = vadd.f32 %v304, %v387
    %v389 = vpop.f32.mrf.mxu0
    %390 = vmatprep.mubr.f32.mxu0 0.0
    %v391 = vand.u32 %v39, 4294901760
    %v392 = vsub.f32 %v39, %v391
    %v393 = vand.u32 %v392, 4294901760
    %394 = vmatmul.mubr.f32.gmra.mxu0 %v393
    %v395 = vpop.f32.mrf.mxu0
    %v396 = vadd.f32 %v311, %v395
    %v397 = vpop.f32.mrf.mxu0
    %398 = vdwg.mxu0
    %399 = vmatprep.subr.mxu0 0.0
    %400 = vmatpush1.msra.mxu0 0.0
    %401 = vmatprep.subr.mxu0 0.0
    %402 = vmatpush1.msra.mxu0 0.0
    %403 = vmatprep.subr.mxu0 0.0
    %404 = vmatpush1.msra.mxu0 0.0
    %405 = vmatprep.subr.mxu0 0.0
    %406 = vmatpush1.msra.mxu0 0.0
    %407 = vmatprep.subr.mxu0 0.0
    %408 = vmatpush1.msra.mxu0 0.0
    %409 = vmatprep.subr.mxu0 0.0
    %410 = vmatpush1.msra.mxu0 0.0
    %411 = vmatprep.subr.mxu0 0.0
    %412 = vmatpush1.msra.mxu0 0.0
    %413 = vmatprep.subr.mxu0 0.0
    %414 = vmatpush1.msra.mxu0 0.0
    %415 = vmatprep.subr.mxu0 0.0
    %416 = vmatpush1.msra.mxu0 0.0
    %417 = vmatprep.subr.mxu0 0.0
    %418 = vmatpush1.msra.mxu0 0.0
    %419 = vmatprep.subr.mxu0 0.0
    %420 = vmatpush1.msra.mxu0 0.0
    %421 = vmatprep.subr.mxu0 0.0
    %422 = vmatpush1.msra.mxu0 0.0
    %423 = vmatprep.subr.mxu0 0.0
    %v424 = vand.u32 %v26, 4294901760
    %v425 = vsub.f32 %v26, %v424
    %v426 = vand.u32 %v425, 4294901760
    %427 = vmatpush1.msra.mxu0 %v426
    %428 = vmatprep.subr.mxu0 0.0
    %v429 = vand.u32 %v25, 4294901760
    %v430 = vsub.f32 %v25, %v429
    %v431 = vand.u32 %v430, 4294901760
    %432 = vmatpush1.msra.mxu0 %v431
    %433 = vmatprep.subr.mxu0 0.0
    %v434 = vand.u32 %v24, 4294901760
    %v435 = vsub.f32 %v24, %v434
    %v436 = vand.u32 %v435, 4294901760
    %437 = vmatpush1.msra.mxu0 %v436
    %438 = vmatprep.subr.mxu0 0.0
    %v439 = vand.u32 %v23, 4294901760
    %v440 = vsub.f32 %v23, %v439
    %v441 = vand.u32 %v440, 4294901760
    %442 = vmatpush1.msra.mxu0 %v441
    %443 = vmatprep.subr.mxu0 0.0
    %444 = vmatpush2.msra.mxu0 0.0
    %445 = vmatprep.subr.mxu0 0.0
    %446 = vmatpush2.msra.mxu0 0.0
    %447 = vmatprep.subr.mxu0 0.0
    %448 = vmatpush2.msra.mxu0 0.0
    %449 = vmatprep.subr.mxu0 0.0
    %450 = vmatpush2.msra.mxu0 0.0
    %451 = vmatprep.subr.mxu0 0.0
    %452 = vmatpush2.msra.mxu0 0.0
    %453 = vmatprep.subr.mxu0 0.0
    %454 = vmatpush2.msra.mxu0 0.0
    %455 = vmatprep.subr.mxu0 0.0
    %456 = vmatpush2.msra.mxu0 0.0
    %457 = vmatprep.subr.mxu0 0.0
    %458 = vmatpush2.msra.mxu0 0.0
    %459 = vmatprep.subr.mxu0 0.0
    %460 = vmatpush2.msra.mxu0 0.0
    %461 = vmatprep.subr.mxu0 0.0
    %462 = vmatpush2.msra.mxu0 0.0
    %463 = vmatprep.subr.mxu0 0.0
    %464 = vmatpush2.msra.mxu0 0.0
    %465 = vmatprep.subr.mxu0 0.0
    %466 = vmatpush2.msra.mxu0 0.0
    %467 = vmatprep.subr.mxu0 0.0
    %468 = vmatpush2.msra.mxu0 0.0
    %469 = vmatprep.subr.mxu0 0.0
    %470 = vmatpush2.msra.mxu0 0.0
    %471 = vmatprep.subr.mxu0 0.0
    %472 = vmatpush2.msra.mxu0 0.0
    %473 = vmatprep.subr.mxu0 0.0
    %474 = vmatpush2.msra.mxu0 0.0
    %475 = vmatprep.mubr.f32.mxu0 0.0
    %v476 = vand.u32 %v36, 4294901760
    %477 = vmatmul.mubr.f32.gmra.mxu0 %v476
    %v478 = vpop.f32.mrf.mxu0
    %v479 = vadd.f32 %v388, %v478
    %v480 = vpop.f32.mrf.mxu0
    %481 = vmatprep.mubr.f32.mxu0 0.0
    %v482 = vand.u32 %v39, 4294901760
    %483 = vmatmul.mubr.f32.gmra.mxu0 %v482
    %v484 = vpop.f32.mrf.mxu0
    %v485 = vadd.f32 %v396, %v484
    %v486 = vpop.f32.mrf.mxu0
    %487 = vdwg.mxu0
    %488 = vmatprep.subr.mxu0 0.0
    %489 = vmatpush1.msra.mxu0 0.0
    %490 = vmatprep.subr.mxu0 0.0
    %491 = vmatpush1.msra.mxu0 0.0
    %492 = vmatprep.subr.mxu0 0.0
    %493 = vmatpush1.msra.mxu0 0.0
    %494 = vmatprep.subr.mxu0 0.0
    %495 = vmatpush1.msra.mxu0 0.0
    %496 = vmatprep.subr.mxu0 0.0
    %497 = vmatpush1.msra.mxu0 0.0
    %498 = vmatprep.subr.mxu0 0.0
    %499 = vmatpush1.msra.mxu0 0.0
    %500 = vmatprep.subr.mxu0 0.0
    %501 = vmatpush1.msra.mxu0 0.0
    %502 = vmatprep.subr.mxu0 0.0
    %503 = vmatpush1.msra.mxu0 0.0
    %504 = vmatprep.subr.mxu0 0.0
    %505 = vmatpush1.msra.mxu0 0.0
    %506 = vmatprep.subr.mxu0 0.0
    %507 = vmatpush1.msra.mxu0 0.0
    %508 = vmatprep.subr.mxu0 0.0
    %509 = vmatpush1.msra.mxu0 0.0
    %510 = vmatprep.subr.mxu0 0.0
    %511 = vmatpush1.msra.mxu0 0.0
    %512 = vmatprep.subr.mxu0 0.0
    %v513 = vand.u32 %v26, 4294901760
    %514 = vmatpush1.msra.mxu0 %v513
    %515 = vmatprep.subr.mxu0 0.0
    %v516 = vand.u32 %v25, 4294901760
    %517 = vmatpush1.msra.mxu0 %v516
    %518 = vmatprep.subr.mxu0 0.0
    %v519 = vand.u32 %v24, 4294901760
    %520 = vmatpush1.msra.mxu0 %v519
    %521 = vmatprep.subr.mxu0 0.0
    %v522 = vand.u32 %v23, 4294901760
    %523 = vmatpush1.msra.mxu0 %v522
    %524 = vmatprep.subr.mxu0 0.0
    %525 = vmatpush2.msra.mxu0 0.0
    %526 = vmatprep.subr.mxu0 0.0
    %527 = vmatpush2.msra.mxu0 0.0
    %528 = vmatprep.subr.mxu0 0.0
    %529 = vmatpush2.msra.mxu0 0.0
    %530 = vmatprep.subr.mxu0 0.0
    %531 = vmatpush2.msra.mxu0 0.0
    %532 = vmatprep.subr.mxu0 0.0
    %533 = vmatpush2.msra.mxu0 0.0
    %534 = vmatprep.subr.mxu0 0.0
    %535 = vmatpush2.msra.mxu0 0.0
    %536 = vmatprep.subr.mxu0 0.0
    %537 = vmatpush2.msra.mxu0 0.0
    %538 = vmatprep.subr.mxu0 0.0
    %539 = vmatpush2.msra.mxu0 0.0
    %540 = vmatprep.subr.mxu0 0.0
    %541 = vmatpush2.msra.mxu0 0.0
    %542 = vmatprep.subr.mxu0 0.0
    %543 = vmatpush2.msra.mxu0 0.0
    %544 = vmatprep.subr.mxu0 0.0
    %545 = vmatpush2.msra.mxu0 0.0
    %546 = vmatprep.subr.mxu0 0.0
    %547 = vmatpush2.msra.mxu0 0.0
    %548 = vmatprep.subr.mxu0 0.0
    %549 = vmatpush2.msra.mxu0 0.0
    %550 = vmatprep.subr.mxu0 0.0
    %551 = vmatpush2.msra.mxu0 0.0
    %552 = vmatprep.subr.mxu0 0.0
    %553 = vmatpush2.msra.mxu0 0.0
    %554 = vmatprep.subr.mxu0 0.0
    %555 = vmatpush2.msra.mxu0 0.0
    %556 = vmatprep.mubr.f32.mxu0 0.0
    %v557 = vand.u32 %v36, 4294901760
    %558 = vmatmul.mubr.f32.gmra.mxu0 %v557
    %v559 = vpop.f32.mrf.mxu0
    %v560 = vadd.f32 %v479, %v559
    %v561 = vpop.f32.mrf.mxu0
    %562 = vmatprep.mubr.f32.mxu0 0.0
    %v563 = vand.u32 %v39, 4294901760
    %564 = vmatmul.mubr.f32.gmra.mxu0 %v563
    %v565 = vpop.f32.mrf.mxu0
    %v566 = vadd.f32 %v485, %v565
    %v567 = vpop.f32.mrf.mxu0
    %568 = vdwg.mxu0
    %v569 = vmul.f32 %v560, 0.5
    %v570 = vmul.f32 %v566, 0.5
    %v571 = vmul.f32 %v560, 0.70710677
    %v572 = vmul.f32 %v566, 0.70710677
    %v573 = verf.f32.pop %v571
    %v574 = verf.f32.pop %v572
    %v575 = vadd.f32 %v573, 1.0
    %v576 = vadd.f32 %v574, 1.0
    %v577 = vmul.f32 %v569, %v575
    %v578 = vmul.f32 %v570, %v576
    %v579 = vld [vmem:[%s3] sm:$0xff]
    %v580 = vld [vmem:[%s3 + $0x8] sm:$0xff]
    %v581 = vld [vmem:[%s3 + $0x10] sm:$0xff]
    %v582 = vld [vmem:[%s3 + $0x18] sm:$0xff]
    %v583 = vld [vmem:[%s3 + $0x20] sm:$0xff]
    %v584 = vld [vmem:[%s3 + $0x28] sm:$0xff]
    %v585 = vld [vmem:[%s3 + $0x30] sm:$0xff]
    %v586 = vld [vmem:[%s3 + $0x38] sm:$0xff]
    %v587 = vld [vmem:[%s4] sm:$0x1]
    %v589 = vlaneseq
    %v590 = vshrl.u32 %v589, 7
    %v591 = vsub.s32 0, %v590
    %v592 = vrot.slane %v587, %v591
    %vm594 = vcmask 523264
    %v596 = vsel %vm594, %v577, 0
    %v599 = vsel %vm594, %v578, 0
    %601 = vmatprep.subr.mxu0 0.0
    %602 = vmatpush1.msra.mxu0 0.0
    %603 = vmatprep.subr.mxu0 0.0
    %604 = vmatpush1.msra.mxu0 0.0
    %605 = vmatprep.subr.mxu0 0.0
    %606 = vmatpush1.msra.mxu0 0.0
    %607 = vmatprep.subr.mxu0 0.0
    %608 = vmatpush1.msra.mxu0 0.0
    %609 = vmatprep.subr.mxu0 0.0
    %610 = vmatpush1.msra.mxu0 0.0
    %611 = vmatprep.subr.mxu0 0.0
    %612 = vmatpush1.msra.mxu0 0.0
    %613 = vmatprep.subr.mxu0 0.0
    %614 = vmatpush1.msra.mxu0 0.0
    %615 = vmatprep.subr.mxu0 0.0
    %616 = vmatpush1.msra.mxu0 0.0
    %617 = vmatprep.subr.mxu0 0.0
    %v618 = vand.u32 %v586, 4294901760
    %619 = vmatpush1.msra.mxu0 %v618
    %620 = vmatprep.subr.mxu0 0.0
    %v621 = vand.u32 %v585, 4294901760
    %622 = vmatpush1.msra.mxu0 %v621
    %623 = vmatprep.subr.mxu0 0.0
    %v624 = vand.u32 %v584, 4294901760
    %625 = vmatpush1.msra.mxu0 %v624
    %626 = vmatprep.subr.mxu0 0.0
    %v627 = vand.u32 %v583, 4294901760
    %628 = vmatpush1.msra.mxu0 %v627
    %629 = vmatprep.subr.mxu0 0.0
    %v630 = vand.u32 %v582, 4294901760
    %631 = vmatpush1.msra.mxu0 %v630
    %632 = vmatprep.subr.mxu0 0.0
    %v633 = vand.u32 %v581, 4294901760
    %634 = vmatpush1.msra.mxu0 %v633
    %635 = vmatprep.subr.mxu0 0.0
    %v636 = vand.u32 %v580, 4294901760
    %637 = vmatpush1.msra.mxu0 %v636
    %638 = vmatprep.subr.mxu0 0.0
    %v639 = vand.u32 %v579, 4294901760
    %640 = vmatpush1.msra.mxu0 %v639
    %641 = vmatprep.subr.mxu0 0.0
    %642 = vmatpush2.msra.mxu0 0.0
    %643 = vmatprep.subr.mxu0 0.0
    %644 = vmatpush2.msra.mxu0 0.0
    %645 = vmatprep.subr.mxu0 0.0
    %646 = vmatpush2.msra.mxu0 0.0
    %647 = vmatprep.subr.mxu0 0.0
    %648 = vmatpush2.msra.mxu0 0.0
    %649 = vmatprep.subr.mxu0 0.0
    %650 = vmatpush2.msra.mxu0 0.0
    %651 = vmatprep.subr.mxu0 0.0
    %652 = vmatpush2.msra.mxu0 0.0
    %653 = vmatprep.subr.mxu0 0.0
    %654 = vmatpush2.msra.mxu0 0.0
    %655 = vmatprep.subr.mxu0 0.0
    %656 = vmatpush2.msra.mxu0 0.0
    %657 = vmatprep.subr.mxu0 0.0
    %658 = vmatpush2.msra.mxu0 0.0
    %659 = vmatprep.subr.mxu0 0.0
    %660 = vmatpush2.msra.mxu0 0.0
    %661 = vmatprep.subr.mxu0 0.0
    %662 = vmatpush2.msra.mxu0 0.0
    %663 = vmatprep.subr.mxu0 0.0
    %664 = vmatpush2.msra.mxu0 0.0
    %665 = vmatprep.subr.mxu0 0.0
    %666 = vmatpush2.msra.mxu0 0.0
    %667 = vmatprep.subr.mxu0 0.0
    %668 = vmatpush2.msra.mxu0 0.0
    %669 = vmatprep.subr.mxu0 0.0
    %670 = vmatpush2.msra.mxu0 0.0
    %671 = vmatprep.subr.mxu0 0.0
    %672 = vmatpush2.msra.mxu0 0.0
    %673 = vmatprep.mubr.f32.mxu0 0.0
    %v674 = vand.u32 %v596, 4294901760
    %v675 = vsub.f32 %v596, %v674
    %v676 = vand.u32 %v675, 4294901760
    %v677 = vsub.f32 %v675, %v676
    %v678 = vand.u32 %v677, 4294901760
    %679 = vmatmul.mubr.f32.gmra.mxu0 %v678
    %v680 = vpop.f32.mrf.mxu0
    %v681 = vadd.f32 %v592, %v680
    %v682 = vpop.f32.mrf.mxu0
    %683 = vmatprep.mubr.f32.mxu0 0.0
    %v684 = vand.u32 %v599, 4294901760
    %v685 = vsub.f32 %v599, %v684
    %v686 = vand.u32 %v685, 4294901760
    %v687 = vsub.f32 %v685, %v686
    %v688 = vand.u32 %v687, 4294901760
    %689 = vmatmul.mubr.f32.gmra.mxu0 %v688
    %v690 = vpop.f32.mrf.mxu0
    %v691 = vadd.f32 %v592, %v690
    %v692 = vpop.f32.mrf.mxu0
    %693 = vdwg.mxu0
    %694 = vmatprep.subr.mxu0 0.0
    %695 = vmatpush1.msra.mxu0 0.0
    %696 = vmatprep.subr.mxu0 0.0
    %697 = vmatpush1.msra.mxu0 0.0
    %698 = vmatprep.subr.mxu0 0.0
    %699 = vmatpush1.msra.mxu0 0.0
    %700 = vmatprep.subr.mxu0 0.0
    %701 = vmatpush1.msra.mxu0 0.0
    %702 = vmatprep.subr.mxu0 0.0
    %703 = vmatpush1.msra.mxu0 0.0
    %704 = vmatprep.subr.mxu0 0.0
    %705 = vmatpush1.msra.mxu0 0.0
    %706 = vmatprep.subr.mxu0 0.0
    %707 = vmatpush1.msra.mxu0 0.0
    %708 = vmatprep.subr.mxu0 0.0
    %709 = vmatpush1.msra.mxu0 0.0
    %710 = vmatprep.subr.mxu0 0.0
    %v711 = vand.u32 %v586, 4294901760
    %v712 = vsub.f32 %v586, %v711
    %v713 = vand.u32 %v712, 4294901760
    %v714 = vsub.f32 %v712, %v713
    %v715 = vand.u32 %v714, 4294901760
    %716 = vmatpush1.msra.mxu0 %v715
    %717 = vmatprep.subr.mxu0 0.0
    %v718 = vand.u32 %v585, 4294901760
    %v719 = vsub.f32 %v585, %v718
    %v720 = vand.u32 %v719, 4294901760
    %v721 = vsub.f32 %v719, %v720
    %v722 = vand.u32 %v721, 4294901760
    %723 = vmatpush1.msra.mxu0 %v722
    %724 = vmatprep.subr.mxu0 0.0
    %v725 = vand.u32 %v584, 4294901760
    %v726 = vsub.f32 %v584, %v725
    %v727 = vand.u32 %v726, 4294901760
    %v728 = vsub.f32 %v726, %v727
    %v729 = vand.u32 %v728, 4294901760
    %730 = vmatpush1.msra.mxu0 %v729
    %731 = vmatprep.subr.mxu0 0.0
    %v732 = vand.u32 %v583, 4294901760
    %v733 = vsub.f32 %v583, %v732
    %v734 = vand.u32 %v733, 4294901760
    %v735 = vsub.f32 %v733, %v734
    %v736 = vand.u32 %v735, 4294901760
    %737 = vmatpush1.msra.mxu0 %v736
    %738 = vmatprep.subr.mxu0 0.0
    %v739 = vand.u32 %v582, 4294901760
    %v740 = vsub.f32 %v582, %v739
    %v741 = vand.u32 %v740, 4294901760
    %v742 = vsub.f32 %v740, %v741
    %v743 = vand.u32 %v742, 4294901760
    %744 = vmatpush1.msra.mxu0 %v743
    %745 = vmatprep.subr.mxu0 0.0
    %v746 = vand.u32 %v581, 4294901760
    %v747 = vsub.f32 %v581, %v746
    %v748 = vand.u32 %v747, 4294901760
    %v749 = vsub.f32 %v747, %v748
    %v750 = vand.u32 %v749, 4294901760
    %751 = vmatpush1.msra.mxu0 %v750
    %752 = vmatprep.subr.mxu0 0.0
    %v753 = vand.u32 %v580, 4294901760
    %v754 = vsub.f32 %v580, %v753
    %v755 = vand.u32 %v754, 4294901760
    %v756 = vsub.f32 %v754, %v755
    %v757 = vand.u32 %v756, 4294901760
    %758 = vmatpush1.msra.mxu0 %v757
    %759 = vmatprep.subr.mxu0 0.0
    %v760 = vand.u32 %v579, 4294901760
    %v761 = vsub.f32 %v579, %v760
    %v762 = vand.u32 %v761, 4294901760
    %v763 = vsub.f32 %v761, %v762
    %v764 = vand.u32 %v763, 4294901760
    %765 = vmatpush1.msra.mxu0 %v764
    %766 = vmatprep.subr.mxu0 0.0
    %767 = vmatpush2.msra.mxu0 0.0
    %768 = vmatprep.subr.mxu0 0.0
    %769 = vmatpush2.msra.mxu0 0.0
    %770 = vmatprep.subr.mxu0 0.0
    %771 = vmatpush2.msra.mxu0 0.0
    %772 = vmatprep.subr.mxu0 0.0
    %773 = vmatpush2.msra.mxu0 0.0
    %774 = vmatprep.subr.mxu0 0.0
    %775 = vmatpush2.msra.mxu0 0.0
    %776 = vmatprep.subr.mxu0 0.0
    %777 = vmatpush2.msra.mxu0 0.0
    %778 = vmatprep.subr.mxu0 0.0
    %779 = vmatpush2.msra.mxu0 0.0
    %780 = vmatprep.subr.mxu0 0.0
    %781 = vmatpush2.msra.mxu0 0.0
    %782 = vmatprep.subr.mxu0 0.0
    %783 = vmatpush2.msra.mxu0 0.0
    %784 = vmatprep.subr.mxu0 0.0
    %785 = vmatpush2.msra.mxu0 0.0
    %786 = vmatprep.subr.mxu0 0.0
    %787 = vmatpush2.msra.mxu0 0.0
    %788 = vmatprep.subr.mxu0 0.0
    %789 = vmatpush2.msra.mxu0 0.0
    %790 = vmatprep.subr.mxu0 0.0
    %791 = vmatpush2.msra.mxu0 0.0
    %792 = vmatprep.subr.mxu0 0.0
    %793 = vmatpush2.msra.mxu0 0.0
    %794 = vmatprep.subr.mxu0 0.0
    %795 = vmatpush2.msra.mxu0 0.0
    %796 = vmatprep.subr.mxu0 0.0
    %797 = vmatpush2.msra.mxu0 0.0
    %798 = vmatprep.mubr.f32.mxu0 0.0
    %v799 = vand.u32 %v596, 4294901760
    %800 = vmatmul.mubr.f32.gmra.mxu0 %v799
    %v801 = vpop.f32.mrf.mxu0
    %v802 = vadd.f32 %v681, %v801
    %v803 = vpop.f32.mrf.mxu0
    %804 = vmatprep.mubr.f32.mxu0 0.0
    %v805 = vand.u32 %v599, 4294901760
    %806 = vmatmul.mubr.f32.gmra.mxu0 %v805
    %v807 = vpop.f32.mrf.mxu0
    %v808 = vadd.f32 %v691, %v807
    %v809 = vpop.f32.mrf.mxu0
    %810 = vdwg.mxu0
    %811 = vmatprep.subr.mxu0 0.0
    %812 = vmatpush1.msra.mxu0 0.0
    %813 = vmatprep.subr.mxu0 0.0
    %814 = vmatpush1.msra.mxu0 0.0
    %815 = vmatprep.subr.mxu0 0.0
    %816 = vmatpush1.msra.mxu0 0.0
    %817 = vmatprep.subr.mxu0 0.0
    %818 = vmatpush1.msra.mxu0 0.0
    %819 = vmatprep.subr.mxu0 0.0
    %820 = vmatpush1.msra.mxu0 0.0
    %821 = vmatprep.subr.mxu0 0.0
    %822 = vmatpush1.msra.mxu0 0.0
    %823 = vmatprep.subr.mxu0 0.0
    %824 = vmatpush1.msra.mxu0 0.0
    %825 = vmatprep.subr.mxu0 0.0
    %826 = vmatpush1.msra.mxu0 0.0
    %827 = vmatprep.subr.mxu0 0.0
    %v828 = vand.u32 %v586, 4294901760
    %v829 = vsub.f32 %v586, %v828
    %830 = vmatpush1.msra.mxu0 %v829
    %831 = vmatprep.subr.mxu0 0.0
    %v832 = vand.u32 %v585, 4294901760
    %v833 = vsub.f32 %v585, %v832
    %834 = vmatpush1.msra.mxu0 %v833
    %835 = vmatprep.subr.mxu0 0.0
    %v836 = vand.u32 %v584, 4294901760
    %v837 = vsub.f32 %v584, %v836
    %838 = vmatpush1.msra.mxu0 %v837
    %839 = vmatprep.subr.mxu0 0.0
    %v840 = vand.u32 %v583, 4294901760
    %v841 = vsub.f32 %v583, %v840
    %842 = vmatpush1.msra.mxu0 %v841
    %843 = vmatprep.subr.mxu0 0.0
    %v844 = vand.u32 %v582, 4294901760
    %v845 = vsub.f32 %v582, %v844
    %846 = vmatpush1.msra.mxu0 %v845
    %847 = vmatprep.subr.mxu0 0.0
    %v848 = vand.u32 %v581, 4294901760
    %v849 = vsub.f32 %v581, %v848
    %850 = vmatpush1.msra.mxu0 %v849
    %851 = vmatprep.subr.mxu0 0.0
    %v852 = vand.u32 %v580, 4294901760
    %v853 = vsub.f32 %v580, %v852
    %854 = vmatpush1.msra.mxu0 %v853
    %855 = vmatprep.subr.mxu0 0.0
    %v856 = vand.u32 %v579, 4294901760
    %v857 = vsub.f32 %v579, %v856
    %858 = vmatpush1.msra.mxu0 %v857
    %859 = vmatprep.subr.mxu0 0.0
    %860 = vmatpush2.msra.mxu0 0.0
    %861 = vmatprep.subr.mxu0 0.0
    %862 = vmatpush2.msra.mxu0 0.0
    %863 = vmatprep.subr.mxu0 0.0
    %864 = vmatpush2.msra.mxu0 0.0
    %865 = vmatprep.subr.mxu0 0.0
    %866 = vmatpush2.msra.mxu0 0.0
    %867 = vmatprep.subr.mxu0 0.0
    %868 = vmatpush2.msra.mxu0 0.0
    %869 = vmatprep.subr.mxu0 0.0
    %870 = vmatpush2.msra.mxu0 0.0
    %871 = vmatprep.subr.mxu0 0.0
    %872 = vmatpush2.msra.mxu0 0.0
    %873 = vmatprep.subr.mxu0 0.0
    %874 = vmatpush2.msra.mxu0 0.0
    %875 = vmatprep.subr.mxu0 0.0
    %876 = vmatpush2.msra.mxu0 0.0
    %877 = vmatprep.subr.mxu0 0.0
    %878 = vmatpush2.msra.mxu0 0.0
    %879 = vmatprep.subr.mxu0 0.0
    %880 = vmatpush2.msra.mxu0 0.0
    %881 = vmatprep.subr.mxu0 0.0
    %882 = vmatpush2.msra.mxu0 0.0
    %883 = vmatprep.subr.mxu0 0.0
    %884 = vmatpush2.msra.mxu0 0.0
    %885 = vmatprep.subr.mxu0 0.0
    %886 = vmatpush2.msra.mxu0 0.0
    %887 = vmatprep.subr.mxu0 0.0
    %888 = vmatpush2.msra.mxu0 0.0
    %889 = vmatprep.subr.mxu0 0.0
    %890 = vmatpush2.msra.mxu0 0.0
    %891 = vmatprep.mubr.f32.mxu0 0.0
    %v892 = vand.u32 %v596, 4294901760
    %v893 = vsub.f32 %v596, %v892
    %894 = vmatmul.mubr.f32.gmra.mxu0 %v893
    %v895 = vpop.f32.mrf.mxu0
    %v896 = vadd.f32 %v802, %v895
    %v897 = vpop.f32.mrf.mxu0
    %898 = vmatprep.mubr.f32.mxu0 0.0
    %v899 = vand.u32 %v599, 4294901760
    %v900 = vsub.f32 %v599, %v899
    %901 = vmatmul.mubr.f32.gmra.mxu0 %v900
    %v902 = vpop.f32.mrf.mxu0
    %v903 = vadd.f32 %v808, %v902
    %v904 = vpop.f32.mrf.mxu0
    %905 = vdwg.mxu0
    %906 = vmatprep.subr.mxu0 0.0
    %907 = vmatpush1.msra.mxu0 0.0
    %908 = vmatprep.subr.mxu0 0.0
    %909 = vmatpush1.msra.mxu0 0.0
    %910 = vmatprep.subr.mxu0 0.0
    %911 = vmatpush1.msra.mxu0 0.0
    %912 = vmatprep.subr.mxu0 0.0
    %913 = vmatpush1.msra.mxu0 0.0
    %914 = vmatprep.subr.mxu0 0.0
    %915 = vmatpush1.msra.mxu0 0.0
    %916 = vmatprep.subr.mxu0 0.0
    %917 = vmatpush1.msra.mxu0 0.0
    %918 = vmatprep.subr.mxu0 0.0
    %919 = vmatpush1.msra.mxu0 0.0
    %920 = vmatprep.subr.mxu0 0.0
    %921 = vmatpush1.msra.mxu0 0.0
    %922 = vmatprep.subr.mxu0 0.0
    %v923 = vand.u32 %v586, 4294901760
    %924 = vmatpush1.msra.mxu0 %v923
    %925 = vmatprep.subr.mxu0 0.0
    %v926 = vand.u32 %v585, 4294901760
    %927 = vmatpush1.msra.mxu0 %v926
    %928 = vmatprep.subr.mxu0 0.0
    %v929 = vand.u32 %v584, 4294901760
    %930 = vmatpush1.msra.mxu0 %v929
    %931 = vmatprep.subr.mxu0 0.0
    %v932 = vand.u32 %v583, 4294901760
    %933 = vmatpush1.msra.mxu0 %v932
    %934 = vmatprep.subr.mxu0 0.0
    %v935 = vand.u32 %v582, 4294901760
    %936 = vmatpush1.msra.mxu0 %v935
    %937 = vmatprep.subr.mxu0 0.0
    %v938 = vand.u32 %v581, 4294901760
    %939 = vmatpush1.msra.mxu0 %v938
    %940 = vmatprep.subr.mxu0 0.0
    %v941 = vand.u32 %v580, 4294901760
    %942 = vmatpush1.msra.mxu0 %v941
    %943 = vmatprep.subr.mxu0 0.0
    %v944 = vand.u32 %v579, 4294901760
    %945 = vmatpush1.msra.mxu0 %v944
    %946 = vmatprep.subr.mxu0 0.0
    %947 = vmatpush2.msra.mxu0 0.0
    %948 = vmatprep.subr.mxu0 0.0
    %949 = vmatpush2.msra.mxu0 0.0
    %950 = vmatprep.subr.mxu0 0.0
    %951 = vmatpush2.msra.mxu0 0.0
    %952 = vmatprep.subr.mxu0 0.0
    %953 = vmatpush2.msra.mxu0 0.0
    %954 = vmatprep.subr.mxu0 0.0
    %955 = vmatpush2.msra.mxu0 0.0
    %956 = vmatprep.subr.mxu0 0.0
    %957 = vmatpush2.msra.mxu0 0.0
    %958 = vmatprep.subr.mxu0 0.0
    %959 = vmatpush2.msra.mxu0 0.0
    %960 = vmatprep.subr.mxu0 0.0
    %961 = vmatpush2.msra.mxu0 0.0
    %962 = vmatprep.subr.mxu0 0.0
    %963 = vmatpush2.msra.mxu0 0.0
    %964 = vmatprep.subr.mxu0 0.0
    %965 = vmatpush2.msra.mxu0 0.0
    %966 = vmatprep.subr.mxu0 0.0
    %967 = vmatpush2.msra.mxu0 0.0
    %968 = vmatprep.subr.mxu0 0.0
    %969 = vmatpush2.msra.mxu0 0.0
    %970 = vmatprep.subr.mxu0 0.0
    %971 = vmatpush2.msra.mxu0 0.0
    %972 = vmatprep.subr.mxu0 0.0
    %973 = vmatpush2.msra.mxu0 0.0
    %974 = vmatprep.subr.mxu0 0.0
    %975 = vmatpush2.msra.mxu0 0.0
    %976 = vmatprep.subr.mxu0 0.0
    %977 = vmatpush2.msra.mxu0 0.0
    %978 = vmatprep.mubr.f32.mxu0 0.0
    %v979 = vand.u32 %v596, 4294901760
    %v980 = vsub.f32 %v596, %v979
    %v981 = vand.u32 %v980, 4294901760
    %982 = vmatmul.mubr.f32.gmra.mxu0 %v981
    %v983 = vpop.f32.mrf.mxu0
    %v984 = vadd.f32 %v896, %v983
    %v985 = vpop.f32.mrf.mxu0
    %986 = vmatprep.mubr.f32.mxu0 0.0
    %v987 = vand.u32 %v599, 4294901760
    %v988 = vsub.f32 %v599, %v987
    %v989 = vand.u32 %v988, 4294901760
    %990 = vmatmul.mubr.f32.gmra.mxu0 %v989
    %v991 = vpop.f32.mrf.mxu0
    %v992 = vadd.f32 %v903, %v991
    %v993 = vpop.f32.mrf.mxu0
    %994 = vdwg.mxu0
    %995 = vmatprep.subr.mxu0 0.0
    %996 = vmatpush1.msra.mxu0 0.0
    %997 = vmatprep.subr.mxu0 0.0
    %998 = vmatpush1.msra.mxu0 0.0
    %999 = vmatprep.subr.mxu0 0.0
    %1000 = vmatpush1.msra.mxu0 0.0
    %1001 = vmatprep.subr.mxu0 0.0
    %1002 = vmatpush1.msra.mxu0 0.0
    %1003 = vmatprep.subr.mxu0 0.0
    %1004 = vmatpush1.msra.mxu0 0.0
    %1005 = vmatprep.subr.mxu0 0.0
    %1006 = vmatpush1.msra.mxu0 0.0
    %1007 = vmatprep.subr.mxu0 0.0
    %1008 = vmatpush1.msra.mxu0 0.0
    %1009 = vmatprep.subr.mxu0 0.0
    %1010 = vmatpush1.msra.mxu0 0.0
    %1011 = vmatprep.subr.mxu0 0.0
    %v1012 = vand.u32 %v586, 4294901760
    %v1013 = vsub.f32 %v586, %v1012
    %v1014 = vand.u32 %v1013, 4294901760
    %1015 = vmatpush1.msra.mxu0 %v1014
    %1016 = vmatprep.subr.mxu0 0.0
    %v1017 = vand.u32 %v585, 4294901760
    %v1018 = vsub.f32 %v585, %v1017
    %v1019 = vand.u32 %v1018, 4294901760
    %1020 = vmatpush1.msra.mxu0 %v1019
    %1021 = vmatprep.subr.mxu0 0.0
    %v1022 = vand.u32 %v584, 4294901760
    %v1023 = vsub.f32 %v584, %v1022
    %v1024 = vand.u32 %v1023, 4294901760
    %1025 = vmatpush1.msra.mxu0 %v1024
    %1026 = vmatprep.subr.mxu0 0.0
    %v1027 = vand.u32 %v583, 4294901760
    %v1028 = vsub.f32 %v583, %v1027
    %v1029 = vand.u32 %v1028, 4294901760
    %1030 = vmatpush1.msra.mxu0 %v1029
    %1031 = vmatprep.subr.mxu0 0.0
    %v1032 = vand.u32 %v582, 4294901760
    %v1033 = vsub.f32 %v582, %v1032
    %v1034 = vand.u32 %v1033, 4294901760
    %1035 = vmatpush1.msra.mxu0 %v1034
    %1036 = vmatprep.subr.mxu0 0.0
    %v1037 = vand.u32 %v581, 4294901760
    %v1038 = vsub.f32 %v581, %v1037
    %v1039 = vand.u32 %v1038, 4294901760
    %1040 = vmatpush1.msra.mxu0 %v1039
    %1041 = vmatprep.subr.mxu0 0.0
    %v1042 = vand.u32 %v580, 4294901760
    %v1043 = vsub.f32 %v580, %v1042
    %v1044 = vand.u32 %v1043, 4294901760
    %1045 = vmatpush1.msra.mxu0 %v1044
    %1046 = vmatprep.subr.mxu0 0.0
    %v1047 = vand.u32 %v579, 4294901760
    %v1048 = vsub.f32 %v579, %v1047
    %v1049 = vand.u32 %v1048, 4294901760
    %1050 = vmatpush1.msra.mxu0 %v1049
    %1051 = vmatprep.subr.mxu0 0.0
    %1052 = vmatpush2.msra.mxu0 0.0
    %1053 = vmatprep.subr.mxu0 0.0
    %1054 = vmatpush2.msra.mxu0 0.0
    %1055 = vmatprep.subr.mxu0 0.0
    %1056 = vmatpush2.msra.mxu0 0.0
    %1057 = vmatprep.subr.mxu0 0.0
    %1058 = vmatpush2.msra.mxu0 0.0
    %1059 = vmatprep.subr.mxu0 0.0
    %1060 = vmatpush2.msra.mxu0 0.0
    %1061 = vmatprep.subr.mxu0 0.0
    %1062 = vmatpush2.msra.mxu0 0.0
    %1063 = vmatprep.subr.mxu0 0.0
    %1064 = vmatpush2.msra.mxu0 0.0
    %1065 = vmatprep.subr.mxu0 0.0
    %1066 = vmatpush2.msra.mxu0 0.0
    %1067 = vmatprep.subr.mxu0 0.0
    %1068 = vmatpush2.msra.mxu0 0.0
    %1069 = vmatprep.subr.mxu0 0.0
    %1070 = vmatpush2.msra.mxu0 0.0
    %1071 = vmatprep.subr.mxu0 0.0
    %1072 = vmatpush2.msra.mxu0 0.0
    %1073 = vmatprep.subr.mxu0 0.0
    %1074 = vmatpush2.msra.mxu0 0.0
    %1075 = vmatprep.subr.mxu0 0.0
    %1076 = vmatpush2.msra.mxu0 0.0
    %1077 = vmatprep.subr.mxu0 0.0
    %1078 = vmatpush2.msra.mxu0 0.0
    %1079 = vmatprep.subr.mxu0 0.0
    %1080 = vmatpush2.msra.mxu0 0.0
    %1081 = vmatprep.subr.mxu0 0.0
    %1082 = vmatpush2.msra.mxu0 0.0
    %1083 = vmatprep.mubr.f32.mxu0 0.0
    %v1084 = vand.u32 %v596, 4294901760
    %1085 = vmatmul.mubr.f32.gmra.mxu0 %v1084
    %v1086 = vpop.f32.mrf.mxu0
    %v1087 = vadd.f32 %v984, %v1086
    %v1088 = vpop.f32.mrf.mxu0
    %1089 = vmatprep.mubr.f32.mxu0 0.0
    %v1090 = vand.u32 %v599, 4294901760
    %1091 = vmatmul.mubr.f32.gmra.mxu0 %v1090
    %v1092 = vpop.f32.mrf.mxu0
    %v1093 = vadd.f32 %v992, %v1092
    %v1094 = vpop.f32.mrf.mxu0
    %1095 = vdwg.mxu0
    %1096 = vmatprep.subr.mxu0 0.0
    %1097 = vmatpush1.msra.mxu0 0.0
    %1098 = vmatprep.subr.mxu0 0.0
    %1099 = vmatpush1.msra.mxu0 0.0
    %1100 = vmatprep.subr.mxu0 0.0
    %1101 = vmatpush1.msra.mxu0 0.0
    %1102 = vmatprep.subr.mxu0 0.0
    %1103 = vmatpush1.msra.mxu0 0.0
    %1104 = vmatprep.subr.mxu0 0.0
    %1105 = vmatpush1.msra.mxu0 0.0
    %1106 = vmatprep.subr.mxu0 0.0
    %1107 = vmatpush1.msra.mxu0 0.0
    %1108 = vmatprep.subr.mxu0 0.0
    %1109 = vmatpush1.msra.mxu0 0.0
    %1110 = vmatprep.subr.mxu0 0.0
    %1111 = vmatpush1.msra.mxu0 0.0
    %1112 = vmatprep.subr.mxu0 0.0
    %v1113 = vand.u32 %v586, 4294901760
    %1114 = vmatpush1.msra.mxu0 %v1113
    %1115 = vmatprep.subr.mxu0 0.0
    %v1116 = vand.u32 %v585, 4294901760
    %1117 = vmatpush1.msra.mxu0 %v1116
    %1118 = vmatprep.subr.mxu0 0.0
    %v1119 = vand.u32 %v584, 4294901760
    %1120 = vmatpush1.msra.mxu0 %v1119
    %1121 = vmatprep.subr.mxu0 0.0
    %v1122 = vand.u32 %v583, 4294901760
    %1123 = vmatpush1.msra.mxu0 %v1122
    %1124 = vmatprep.subr.mxu0 0.0
    %v1125 = vand.u32 %v582, 4294901760
    %1126 = vmatpush1.msra.mxu0 %v1125
    %1127 = vmatprep.subr.mxu0 0.0
    %v1128 = vand.u32 %v581, 4294901760
    %1129 = vmatpush1.msra.mxu0 %v1128
    %1130 = vmatprep.subr.mxu0 0.0
    %v1131 = vand.u32 %v580, 4294901760
    %1132 = vmatpush1.msra.mxu0 %v1131
    %1133 = vmatprep.subr.mxu0 0.0
    %v1134 = vand.u32 %v579, 4294901760
    %1135 = vmatpush1.msra.mxu0 %v1134
    %1136 = vmatprep.subr.mxu0 0.0
    %1137 = vmatpush2.msra.mxu0 0.0
    %1138 = vmatprep.subr.mxu0 0.0
    %1139 = vmatpush2.msra.mxu0 0.0
    %1140 = vmatprep.subr.mxu0 0.0
    %1141 = vmatpush2.msra.mxu0 0.0
    %1142 = vmatprep.subr.mxu0 0.0
    %1143 = vmatpush2.msra.mxu0 0.0
    %1144 = vmatprep.subr.mxu0 0.0
    %1145 = vmatpush2.msra.mxu0 0.0
    %1146 = vmatprep.subr.mxu0 0.0
    %1147 = vmatpush2.msra.mxu0 0.0
    %1148 = vmatprep.subr.mxu0 0.0
    %1149 = vmatpush2.msra.mxu0 0.0
    %1150 = vmatprep.subr.mxu0 0.0
    %1151 = vmatpush2.msra.mxu0 0.0
    %1152 = vmatprep.subr.mxu0 0.0
    %1153 = vmatpush2.msra.mxu0 0.0
    %1154 = vmatprep.subr.mxu0 0.0
    %1155 = vmatpush2.msra.mxu0 0.0
    %1156 = vmatprep.subr.mxu0 0.0
    %1157 = vmatpush2.msra.mxu0 0.0
    %1158 = vmatprep.subr.mxu0 0.0
    %1159 = vmatpush2.msra.mxu0 0.0
    %1160 = vmatprep.subr.mxu0 0.0
    %1161 = vmatpush2.msra.mxu0 0.0
    %1162 = vmatprep.subr.mxu0 0.0
    %1163 = vmatpush2.msra.mxu0 0.0
    %1164 = vmatprep.subr.mxu0 0.0
    %1165 = vmatpush2.msra.mxu0 0.0
    %1166 = vmatprep.subr.mxu0 0.0
    %1167 = vmatpush2.msra.mxu0 0.0
    %1168 = vmatprep.mubr.f32.mxu0 0.0
    %v1169 = vand.u32 %v596, 4294901760
    %1170 = vmatmul.mubr.f32.gmra.mxu0 %v1169
    %v1171 = vpop.f32.mrf.mxu0
    %v1172 = vadd.f32 %v1087, %v1171
    %v1173 = vpop.f32.mrf.mxu0
    %1174 = vmatprep.mubr.f32.mxu0 0.0
    %v1175 = vand.u32 %v599, 4294901760
    %1176 = vmatmul.mubr.f32.gmra.mxu0 %v1175
    %v1177 = vpop.f32.mrf.mxu0
    %v1178 = vadd.f32 %v1093, %v1177
    %v1179 = vpop.f32.mrf.mxu0
    %1180 = vdwg.mxu0
    %1181 = vst.msk [vmem:[#allocation2] sm:$0xff] %vm34, %v1172
    %1182 = vst.msk [vmem:[#allocation2 + $0x8] sm:$0xff] %vm34, %v1178
    // Predicated region
    $region22: #{tpu_custom_call.1} parent=1 // pred_check
      _
    $region23: #{tpu_custom_call.1} parent=1 // pred_check_branch
      %1184 = sbr.rel (0) target = $region25
    $region24: #{tpu_custom_call.1} parent=1 // pred_region
      %s1186 = ssub.s32 256, 256
      %1187 = vsyncadd [#allocation3], %s1186
      %s1188 = sshll.u32 [#allocation2], 4
      %s1189 = int_to_ptr.vmem [resolvable:$true] %s1188
      %1194 = dma.vmem_to_hbm [thread:$0]  %s1189, 256, %s5, [#allocation3], 128, 128, 8
    $region25: #{tpu_custom_call.1} parent=1 // pred_fallthru
      _
    // Predicated region
    $region26: #{tpu_custom_call.1} parent=1 // pred_check
      _
    $region27: #{tpu_custom_call.1} parent=1 // pred_check_branch
      %1196 = sbr.rel (0) target = $region29
    $region28: #{tpu_custom_call.1} parent=1 // pred_region
      %1197 = dma.done [#allocation3], 256
    $region29: #{tpu_custom_call.1} parent=1 // pred_fallthru
      _
    %1198 = vsyncpa [#allocation3], 1

</llo_original>
